<compile_context>
chip_gen: v7x
topology: tpu7x:2x2x1
jax: 0.10.0
libtpu: 0.0.40
codegen_flags: <defaults>
</compile_context>

<pallas_src>
import math
import functools

import jax
import jax.numpy as jnp
from jax import lax
from jax.experimental import pallas as pl
from jax.experimental.pallas import tpu as pltpu


# ------------------------------ fused kernel --------------------------------

def fused_transformer_kernel(
        x_ref, pe_ref, style_ref,
        ln1w_ref, ln1b_ref,
        wq_ref, bq_ref, wkv_ref, bkv_ref, wo_ref, bo_ref,
        ln2w_ref, ln2b_ref,
        w1_ref, b1_ref, w2_ref, b2_ref,
        o_ref, *, num_heads, batch_block):
    """One (batch-block, layer) grid step of a pre-norm MQA encoder layer.

    The residual stream is kept in the resident output block (same output
    block index for every layer l), so HBM sees one writeback per batch elem.
    """
    l = pl.program_id(1)
    _, S, E = x_ref.shape
    H = num_heads
    hd = E // H
    eps = 1e-5
    bf16 = jnp.bfloat16
    f32 = jnp.float32

    # Layer-0 prologue: fold in positional encoding + style embedding.
    # (Must stay BEFORE the unconditional o_ref reads below.)
    @pl.when(l == 0)
    def _embed():
        for bi in range(batch_block):
            o_ref[bi] = x_ref[bi] + pe_ref[...] + style_ref[bi]

    def layernorm(v, w, b):
        mu = jnp.mean(v, axis=-1, keepdims=True)
        var = jnp.mean(jnp.square(v - mu), axis=-1, keepdims=True)
        return (v - mu) * lax.rsqrt(var + eps) * w + b

    for bi in range(batch_block):
        x = o_ref[bi]                                        # (S, E) f32 residual

        # ---------------- attention sub-layer (pre-norm, multi-query) -------
        xnb = layernorm(x, ln1w_ref[...], ln1b_ref[...]).astype(bf16)

        # Full-width Q projection; 1/sqrt(hd) is pre-folded into wq/bq.
        q2d = jnp.dot(xnb, wq_ref[...],
                      preferred_element_type=f32) + bq_ref[...]          # (S, E)
        # Packed shared K|V projection (lane-dense N = 2*hd), then slice.
        kv = jnp.dot(xnb, wkv_ref[...],
                     preferred_element_type=f32) + bkv_ref[...]          # (S, 2*hd)
        k = kv[:, :hd].astype(bf16)                                      # (S, hd)
        v = kv[:, hd:].astype(bf16)                                      # (S, hd)

        # Stack heads along the M (sublane) axis -> one big scores matmul.
        q_flat = jnp.concatenate(
            [q2d[:, h * hd:(h + 1) * hd] for h in range(H)],
            axis=0).astype(bf16)                                         # (H*S, hd)

        # scores = q_flat @ k^T  (contract last dims directly, shared K).
        s = lax.dot_general(q_flat, k, (((1,), (1,)), ((), ())),
                            preferred_element_type=f32)                  # (H*S, S)
        s = s - jnp.max(s, axis=-1, keepdims=True)
        p = jnp.exp(s)
        p = p * pl.reciprocal(jnp.sum(p, axis=-1, keepdims=True), approx=True)

        ctx = jnp.dot(p.astype(bf16), v, preferred_element_type=f32)     # (H*S, hd)

        # (H*S, hd) -> (S, H*hd = E) reshuffle (cheap static slices + lane
        # concat), then ONE full-K output projection.
        ctx2d = jnp.concatenate(
            [ctx[h * S:(h + 1) * S, :] for h in range(H)],
            axis=-1).astype(bf16)                                        # (S, E)
        attn = jnp.dot(ctx2d, wo_ref[...],
                       preferred_element_type=f32) + bo_ref[...]         # (S, E)

        x = x + attn                          # dropout_rate = 0.0 -> identity

        # ---------------- feed-forward sub-layer (pre-norm) -----------------
        xn2 = layernorm(x, ln2w_ref[...], ln2b_ref[...]).astype(bf16)
        h1 = jnp.dot(xn2, w1_ref[...],
                     preferred_element_type=f32) + b1_ref[...]           # (S, 4E)
        # TODO(synk): FeedForward body unknown; tanh-approx GELU 4xE MLP assumed.
        h1 = jax.nn.gelu(h1, approximate=True)
        ff = jnp.dot(h1.astype(bf16), w2_ref[...],
                     preferred_element_type=f32) + b2_ref[...]           # (S, E)

        o_ref[bi] = x + ff


# -------------------------------- wrapper ------------------------------------

def _vmem_limit_bytes(default_cap=128 * 1024 * 1024):
    """Derive a safe VMEM request from the chip's actual capacity.

    ~48 MiB on v7x (64 MiB physical per TC), ~96 MiB on v5e/v6e (128 MiB),
    leaving headroom for double-buffered weight DMAs and internal scratch.
    """
    try:
        info = pltpu.get_tpu_info()
        cap = int(getattr(info, "vmem_capacity_bytes", default_cap))
    except Exception:
        cap = default_cap
    return min((cap * 3) // 4, 100 * 1024 * 1024)


def _pick_batch_block(B):
    """Amortize per-layer weight DMA over several batch elements while keeping
    >= 2 blocks on the parallel grid axis (v7x megacore)."""
    for cand in (4, 2):
        if B % cand == 0 and B // cand >= 2:
            return cand
    return 1


def transformer_forward(x, params, num_heads, style_id=None, batch_block=None):
    B, S, E = x.shape
    H = num_heads
    hd = E // H
    layers = params['layers']
    L = len(layers)

    if batch_block is None:
        batch_block = _pick_batch_block(B)
    Bb = batch_block
    assert B % Bb == 0, "batch_block must divide the batch size"

    pe = params['pos_enc'][:S].astype(jnp.float32)                     # (S, E)
    if style_id is None:
        style_id = jnp.zeros((B,), dtype=jnp.int32)
    style_emb = params['style_emb'][style_id][:, None, :].astype(jnp.float32)  # (B,1,E)

    bf16 = jnp.bfloat16
    scale = 1.0 / math.sqrt(hd)

    def stack(name):
        return jnp.stack([ly[name] for ly in layers])

    # Fold the attention scale into Wq/bq (free, wrapper side); pack K|V;
    # store all matmul weights bf16 (half the DMA / VMEM footprint).
    wq = (stack('wq') * scale).astype(bf16)                            # (L, E, E)
    bq = stack('bq') * scale                                           # (L, 1, E)
    wkv = jnp.concatenate([stack('wk'), stack('wv')], axis=-1).astype(bf16)  # (L, E, 2hd)
    bkv = jnp.concatenate([stack('bk'), stack('bv')], axis=-1)               # (L, 1, 2hd)

    operands = [
        x,                                        # (B,S,E)   f32
        pe,                                       # (S,E)     f32
        style_emb,                                # (B,1,E)   f32
        stack('ln1_w'), stack('ln1_b'),           # (L,1,E)   f32
        wq, bq,                                   # (L,E,E) bf16 / (L,1,E) f32
        wkv, bkv,                                 # (L,E,2hd) bf16 / (L,1,2hd) f32
        stack('wo').astype(bf16), stack('bo'),    # (L,E,E) bf16 / (L,1,E) f32
        stack('ln2_w'), stack('ln2_b'),           # (L,1,E)   f32
        stack('w1').astype(bf16), stack('b1'),    # (L,E,4E) bf16 / (L,1,4E) f32
        stack('w2').astype(bf16), stack('b2'),    # (L,4E,E) bf16 / (L,1,E) f32
    ]

    def per_layer_spec(a):
        zeros = (0,) * (a.ndim - 1)
        return pl.BlockSpec((None,) + a.shape[1:],
                            lambda b, l, z=zeros: (l,) + z)

    in_specs = [
        pl.BlockSpec((Bb, S, E), lambda b, l: (b, 0, 0)),   # x   (resident per batch block)
        pl.BlockSpec((S, E), lambda b, l: (0, 0)),          # pos enc
        pl.BlockSpec((Bb, 1, E), lambda b, l: (b, 0, 0)),   # style emb
    ] + [per_layer_spec(a) for a in operands[3:]]

    # Advisory cost estimate so XLA schedules the surrounding stacking/casting
    # around the long-running fused kernel.
    flops_l = (2 * S * E * E                  # Q proj
               + 2 * S * E * (2 * hd)         # packed K/V proj
               + 4 * H * S * S * hd           # scores + context
               + 2 * S * E * E                # out proj
               + 4 * S * E * (4 * E))         # FFN up + down
    flops = B * L * flops_l
    transcendentals = B * L * (H * S * S + S * 4 * E)
    layer_bytes = sum(int(a.size // L) * a.dtype.itemsize for a in operands[3:])
    bytes_accessed = ((B // Bb) * L * layer_bytes
                      + 2 * int(x.size) * x.dtype.itemsize
                      + int(pe.size) * 4 + int(style_emb.size) * 4)
    cost = pl.CostEstimate(flops=int(flops),
                           transcendentals=int(transcendentals),
                           bytes_accessed=int(bytes_accessed))

    out = pl.pallas_call(
        functools.partial(fused_transformer_kernel,
                          num_heads=H, batch_block=Bb),
        out_shape=jax.ShapeDtypeStruct((B, S, E), jnp.float32),
        grid=(B // Bb, L),
        in_specs=in_specs,
        # Output block index constant over l -> residual stream stays resident
        # in VMEM; a single HBM writeback per batch element.
        out_specs=pl.BlockSpec((Bb, S, E), lambda b, l: (b, 0, 0)),
        compiler_params=pltpu.CompilerParams(
            dimension_semantics=("parallel", "arbitrary"),
            vmem_limit_bytes=_vmem_limit_bytes()),
        cost_estimate=cost,
    )(*operands)
    return out     # return_hidden = True


# --------------------------- deterministic init ------------------------------

def sinusoidal_pe(max_len, d_model):
    pos = jnp.arange(max_len, dtype=jnp.float32)[:, None]
    div = jnp.exp(jnp.arange(0, d_model, 2, dtype=jnp.float32)
                  * -(math.log(10000.0) / d_model))
    pe = jnp.zeros((max_len, d_model), jnp.float32)
    pe = pe.at[:, 0::2].set(jnp.sin(pos * div))
    pe = pe.at[:, 1::2].set(jnp.cos(pos * div))
    return pe


def init_params(key, embed_dim, num_heads, num_layers, num_styles, max_len):
    E, H = embed_dim, num_heads
    hd = E // H
    ffn = 4 * E
    keys = jax.random.split(key, num_layers * 6 + 1)

    def lin(k, shape):                       # nn.Linear weight ~ N(0, 0.02)
        return jax.random.normal(k, shape, jnp.float32) * 0.02

    params = {
        'pos_enc': sinusoidal_pe(max_len, E),
        'style_emb': jax.random.normal(keys[0], (num_styles, E), jnp.float32) * 0.02,
        'layers': [],
    }
    idx = 1
    for _ in range(num_layers):
        layer = {
            'ln1_w': jnp.ones((1, E), jnp.float32), 'ln1_b': jnp.zeros((1, E), jnp.float32),
            'wq': lin(keys[idx + 0], (E, E)),   'bq': jnp.zeros((1, E), jnp.float32),
            'wk': lin(keys[idx + 1], (E, hd)),  'bk': jnp.zeros((1, hd), jnp.float32),
            'wv': lin(keys[idx + 2], (E, hd)),  'bv': jnp.zeros((1, hd), jnp.float32),
            'wo': lin(keys[idx + 3], (E, E)),   'bo': jnp.zeros((1, E), jnp.float32),
            'ln2_w': jnp.ones((1, E), jnp.float32), 'ln2_b': jnp.zeros((1, E), jnp.float32),
            'w1': lin(keys[idx + 4], (E, ffn)), 'b1': jnp.zeros((1, ffn), jnp.float32),
            'w2': lin(keys[idx + 5], (ffn, E)), 'b2': jnp.zeros((1, E), jnp.float32),
        }
        idx += 6
        params['layers'].append(layer)
    return params


# --------------------------------- main --------------------------------------

if __name__ == "__main__":
    # synthetic config (stands in for load_global_config())
    EMBED_DIM = 32
    NUM_HEADS = 4
    NUM_LAYERS = 2
    NUM_STYLES = 4
    MAX_POS = 16
    BATCH = 2
    SEQ = 8
    # dropout_rate = 0.0 -> dropout is identity

    key = jax.random.PRNGKey(0)
    k_x, k_p = jax.random.split(key)
    x = jax.random.normal(k_x, (BATCH, SEQ, EMBED_DIM), jnp.float32)
    params = init_params(k_p, EMBED_DIM, NUM_HEADS, NUM_LAYERS, NUM_STYLES, MAX_POS)

    fwd = jax.jit(functools.partial(transformer_forward, num_heads=NUM_HEADS))
    out = fwd(x, params)
    out = jax.block_until_ready(out)
    assert out.shape == (BATCH, SEQ, EMBED_DIM)
    assert bool(jnp.all(jnp.isfinite(out)))
    print("KERNEL_OK")
</pallas_src>

<mosaic_0001>
module attributes {stable_mosaic.version = 11 : i64} {
  func.func @fused_transformer_kernel(%arg0: i32, %arg1: i32, %arg2: memref<1x8x32xf32, #tpu.memory_space<vmem>>, %arg3: memref<8x32xf32, #tpu.memory_space<vmem>>, %arg4: memref<1x1x32xf32, #tpu.memory_space<vmem>>, %arg5: memref<1x1x32xf32, #tpu.memory_space<vmem>>, %arg6: memref<1x1x32xf32, #tpu.memory_space<vmem>>, %arg7: memref<1x32x32xbf16, #tpu.memory_space<vmem>>, %arg8: memref<1x1x32xf32, #tpu.memory_space<vmem>>, %arg9: memref<1x32x16xbf16, #tpu.memory_space<vmem>>, %arg10: memref<1x1x16xf32, #tpu.memory_space<vmem>>, %arg11: memref<1x32x32xbf16, #tpu.memory_space<vmem>>, %arg12: memref<1x1x32xf32, #tpu.memory_space<vmem>>, %arg13: memref<1x1x32xf32, #tpu.memory_space<vmem>>, %arg14: memref<1x1x32xf32, #tpu.memory_space<vmem>>, %arg15: memref<1x32x128xbf16, #tpu.memory_space<vmem>>, %arg16: memref<1x1x128xf32, #tpu.memory_space<vmem>>, %arg17: memref<1x128x32xbf16, #tpu.memory_space<vmem>>, %arg18: memref<1x1x32xf32, #tpu.memory_space<vmem>>, %arg19: memref<1x8x32xf32, #tpu.memory_space<vmem>>) attributes {dimension_semantics = [#tpu.dimension_semantics<parallel>, #tpu.dimension_semantics<arbitrary>], iteration_bounds = array<i64: 2, 2>, scalar_prefetch = 0 : i64, scratch_operands = 0 : i64, tpu.core_type = #tpu.core_type<tc>, window_params = [{transform_indices = @transform_0, window_bounds = array<i64: 1, 8, 32>}, {pipeline_mode = #tpu.pipeline_mode<synchronous>, transform_indices = @transform_1, window_bounds = array<i64: 8, 32>}, {transform_indices = @transform_2, window_bounds = array<i64: 1, 1, 32>}, {transform_indices = @transform_3, window_bounds = array<i64: 1, 1, 32>}, {transform_indices = @transform_4, window_bounds = array<i64: 1, 1, 32>}, {transform_indices = @transform_5, window_bounds = array<i64: 1, 32, 32>}, {transform_indices = @transform_6, window_bounds = array<i64: 1, 1, 32>}, {transform_indices = @transform_7, window_bounds = array<i64: 1, 32, 16>}, {transform_indices = @transform_8, window_bounds = array<i64: 1, 1, 16>}, {transform_indices = @transform_9, window_bounds = array<i64: 1, 32, 32>}, {transform_indices = @transform_10, window_bounds = array<i64: 1, 1, 32>}, {transform_indices = @transform_11, window_bounds = array<i64: 1, 1, 32>}, {transform_indices = @transform_12, window_bounds = array<i64: 1, 1, 32>}, {transform_indices = @transform_13, window_bounds = array<i64: 1, 32, 128>}, {transform_indices = @transform_14, window_bounds = array<i64: 1, 1, 128>}, {transform_indices = @transform_15, window_bounds = array<i64: 1, 128, 32>}, {transform_indices = @transform_16, window_bounds = array<i64: 1, 1, 32>}, {transform_indices = @transform_17, window_bounds = array<i64: 1, 8, 32>}]} {
    %c0_i32 = arith.constant 0 : i32
    %0 = arith.cmpi eq, %arg1, %c0_i32 : i32
    %1 = arith.extui %0 : i1 to i32
    %c0_i32_0 = arith.constant 0 : i32
    %2 = arith.cmpi ne, %1, %c0_i32_0 : i32
    scf.if %2 {
      %c0_70 = arith.constant 0 : index
      %c0_71 = arith.constant 0 : index
      %c0_72 = arith.constant 0 : index
      %142 = vector.load %arg2[%c0_70, %c0_71, %c0_72] : memref<1x8x32xf32, #tpu.memory_space<vmem>>, vector<1x8x32xf32>
      %143 = vector.shape_cast %142 : vector<1x8x32xf32> to vector<8x32xf32>
      %c0_73 = arith.constant 0 : index
      %c0_74 = arith.constant 0 : index
      %144 = vector.load %arg3[%c0_73, %c0_74] : memref<8x32xf32, #tpu.memory_space<vmem>>, vector<8x32xf32>
      %145 = arith.addf %143, %144 : vector<8x32xf32>
      %c0_75 = arith.constant 0 : index
      %c0_76 = arith.constant 0 : index
      %c0_77 = arith.constant 0 : index
      %146 = vector.load %arg4[%c0_75, %c0_76, %c0_77] : memref<1x1x32xf32, #tpu.memory_space<vmem>>, vector<1x1x32xf32>
      %147 = vector.shape_cast %146 : vector<1x1x32xf32> to vector<1x32xf32>
      %148 = vector.broadcast %147 : vector<1x32xf32> to vector<8x32xf32>
      %149 = arith.addf %145, %148 : vector<8x32xf32>
      %c0_78 = arith.constant 0 : index
      %c0_79 = arith.constant 0 : index
      %c0_80 = arith.constant 0 : index
      %150 = vector.load %arg19[%c0_78, %c0_79, %c0_80] : memref<1x8x32xf32, #tpu.memory_space<vmem>>, vector<1x8x32xf32>
      %151 = vector.shape_cast %150 : vector<1x8x32xf32> to vector<8x32xf32>
      %152 = vector.shape_cast %149 : vector<8x32xf32> to vector<1x8x32xf32>
      tpu.vector_store %arg19[%c0_78, %c0_79, %c0_80], %152 {strides = array<i32>} : memref<1x8x32xf32, #tpu.memory_space<vmem>>, vector<1x8x32xf32>,
    } else {
    }
    %c0 = arith.constant 0 : index
    %c0_1 = arith.constant 0 : index
    %c0_2 = arith.constant 0 : index
    %3 = vector.load %arg19[%c0, %c0_1, %c0_2] : memref<1x8x32xf32, #tpu.memory_space<vmem>>, vector<1x8x32xf32>
    %4 = vector.shape_cast %3 : vector<1x8x32xf32> to vector<8x32xf32>
    %c0_3 = arith.constant 0 : index
    %c0_4 = arith.constant 0 : index
    %c0_5 = arith.constant 0 : index
    %5 = vector.load %arg5[%c0_3, %c0_4, %c0_5] : memref<1x1x32xf32, #tpu.memory_space<vmem>>, vector<1x1x32xf32>
    %6 = vector.shape_cast %5 : vector<1x1x32xf32> to vector<1x32xf32>
    %c0_6 = arith.constant 0 : index
    %c0_7 = arith.constant 0 : index
    %c0_8 = arith.constant 0 : index
    %7 = vector.load %arg6[%c0_6, %c0_7, %c0_8] : memref<1x1x32xf32, #tpu.memory_space<vmem>>, vector<1x1x32xf32>
    %8 = vector.shape_cast %7 : vector<1x1x32xf32> to vector<1x32xf32>
    %cst = arith.constant dense<0.000000e+00> : vector<8xf32>
    %9 = vector.multi_reduction <add>, %4, %cst [1] : vector<8x32xf32> to vector<8xf32>
    %10 = vector.shape_cast %9 : vector<8xf32> to vector<8x1xf32>
    %cst_9 = arith.constant 3.200000e+01 : f32
    %11 = vector.broadcast %cst_9 : f32 to vector<8x1xf32>
    %12 = arith.divf %10, %11 : vector<8x1xf32>
    %13 = vector.broadcast %12 : vector<8x1xf32> to vector<8x32xf32>
    %14 = arith.subf %4, %13 : vector<8x32xf32>
    %15 = arith.mulf %14, %14 : vector<8x32xf32>
    %cst_10 = arith.constant dense<0.000000e+00> : vector<8xf32>
    %16 = vector.multi_reduction <add>, %15, %cst_10 [1] : vector<8x32xf32> to vector<8xf32>
    %17 = vector.shape_cast %16 : vector<8xf32> to vector<8x1xf32>
    %cst_11 = arith.constant 3.200000e+01 : f32
    %18 = vector.broadcast %cst_11 : f32 to vector<8x1xf32>
    %19 = arith.divf %17, %18 : vector<8x1xf32>
    %20 = vector.broadcast %12 : vector<8x1xf32> to vector<8x32xf32>
    %21 = arith.subf %4, %20 : vector<8x32xf32>
    %cst_12 = arith.constant 9.99999974E-6 : f32
    %22 = vector.broadcast %cst_12 : f32 to vector<8x1xf32>
    %23 = arith.addf %19, %22 : vector<8x1xf32>
    %24 = math.rsqrt %23 : vector<8x1xf32>
    %25 = vector.broadcast %24 : vector<8x1xf32> to vector<8x32xf32>
    %26 = arith.mulf %21, %25 : vector<8x32xf32>
    %27 = vector.broadcast %6 : vector<1x32xf32> to vector<8x32xf32>
    %28 = arith.mulf %26, %27 : vector<8x32xf32>
    %29 = vector.broadcast %8 : vector<1x32xf32> to vector<8x32xf32>
    %30 = arith.addf %28, %29 : vector<8x32xf32>
    %31 = arith.truncf %30 : vector<8x32xf32> to vector<8x32xbf16>
    %c0_13 = arith.constant 0 : index
    %c0_14 = arith.constant 0 : index
    %c0_15 = arith.constant 0 : index
    %32 = vector.load %arg7[%c0_13, %c0_14, %c0_15] : memref<1x32x32xbf16, #tpu.memory_space<vmem>>, vector<1x32x32xbf16>
    %33 = vector.shape_cast %32 : vector<1x32x32xbf16> to vector<32x32xbf16>
    %cst_16 = arith.constant dense<0.000000e+00> : vector<8x32xf32>
    %34 = tpu.matmul %31, %33, %cst_16 {dimension_numbers = #tpu.dot_dimension_numbers<[1], [0], [0], [1], [0, 0, 1, 1], [], []>} : vector<8x32xbf16>, vector<32x32xbf16>, vector<8x32xf32> -> vector<8x32xf32>
    %c0_17 = arith.constant 0 : index
    %c0_18 = arith.constant 0 : index
    %c0_19 = arith.constant 0 : index
    %35 = vector.load %arg8[%c0_17, %c0_18, %c0_19] : memref<1x1x32xf32, #tpu.memory_space<vmem>>, vector<1x1x32xf32>
    %36 = vector.shape_cast %35 : vector<1x1x32xf32> to vector<1x32xf32>
    %37 = vector.broadcast %36 : vector<1x32xf32> to vector<8x32xf32>
    %38 = arith.addf %34, %37 : vector<8x32xf32>
    %c0_20 = arith.constant 0 : index
    %c0_21 = arith.constant 0 : index
    %c0_22 = arith.constant 0 : index
    %39 = vector.load %arg9[%c0_20, %c0_21, %c0_22] : memref<1x32x16xbf16, #tpu.memory_space<vmem>>, vector<1x32x16xbf16>
    %40 = vector.shape_cast %39 : vector<1x32x16xbf16> to vector<32x16xbf16>
    %cst_23 = arith.constant dense<0.000000e+00> : vector<8x16xf32>
    %41 = tpu.matmul %31, %40, %cst_23 {dimension_numbers = #tpu.dot_dimension_numbers<[1], [0], [0], [1], [0, 0, 1, 1], [], []>} : vector<8x32xbf16>, vector<32x16xbf16>, vector<8x16xf32> -> vector<8x16xf32>
    %c0_24 = arith.constant 0 : index
    %c0_25 = arith.constant 0 : index
    %c0_26 = arith.constant 0 : index
    %42 = vector.load %arg10[%c0_24, %c0_25, %c0_26] : memref<1x1x16xf32, #tpu.memory_space<vmem>>, vector<1x1x16xf32>
    %43 = vector.shape_cast %42 : vector<1x1x16xf32> to vector<1x16xf32>
    %44 = vector.broadcast %43 : vector<1x16xf32> to vector<8x16xf32>
    %45 = arith.addf %41, %44 : vector<8x16xf32>
    %46 = vector.extract_strided_slice %45 {offsets = [0, 0], sizes = [8, 8], strides = [1, 1]} : vector<8x16xf32> to vector<8x8xf32>
    %47 = arith.truncf %46 : vector<8x8xf32> to vector<8x8xbf16>
    %48 = vector.extract_strided_slice %45 {offsets = [0, 8], sizes = [8, 8], strides = [1, 1]} : vector<8x16xf32> to vector<8x8xf32>
    %49 = arith.truncf %48 : vector<8x8xf32> to vector<8x8xbf16>
    %50 = vector.extract_strided_slice %38 {offsets = [0, 0], sizes = [8, 8], strides = [1, 1]} : vector<8x32xf32> to vector<8x8xf32>
    %51 = vector.extract_strided_slice %38 {offsets = [0, 8], sizes = [8, 8], strides = [1, 1]} : vector<8x32xf32> to vector<8x8xf32>
    %52 = vector.extract_strided_slice %38 {offsets = [0, 16], sizes = [8, 8], strides = [1, 1]} : vector<8x32xf32> to vector<8x8xf32>
    %53 = vector.extract_strided_slice %38 {offsets = [0, 24], sizes = [8, 8], strides = [1, 1]} : vector<8x32xf32> to vector<8x8xf32>
    %54 = tpu.concatenate %50, %51, %52, %53 in 0 : vector<8x8xf32>, vector<8x8xf32>, vector<8x8xf32>, vector<8x8xf32> -> vector<32x8xf32>
    %55 = arith.truncf %54 : vector<32x8xf32> to vector<32x8xbf16>
    %cst_27 = arith.constant dense<0.000000e+00> : vector<32x8xf32>
    %56 = tpu.matmul %55, %47, %cst_27 {dimension_numbers = #tpu.dot_dimension_numbers<[1], [1], [0], [0], [0, 0, 1, 0], [], []>} : vector<32x8xbf16>, vector<8x8xbf16>, vector<32x8xf32> -> vector<32x8xf32>
    %cst_28 = arith.constant dense<0xFF800000> : vector<32xf32>
    %57 = vector.multi_reduction <maximumf>, %56, %cst_28 [1] : vector<32x8xf32> to vector<32xf32>
    %58 = vector.shape_cast %57 : vector<32xf32> to vector<32x1xf32>
    %59 = vector.broadcast %58 : vector<32x1xf32> to vector<32x8xf32>
    %60 = arith.subf %56, %59 : vector<32x8xf32>
    %61 = math.exp %60 : vector<32x8xf32>
    %cst_29 = arith.constant dense<0.000000e+00> : vector<32xf32>
    %62 = vector.multi_reduction <add>, %61, %cst_29 [1] : vector<32x8xf32> to vector<32xf32>
    %63 = vector.shape_cast %62 : vector<32xf32> to vector<32x1xf32>
    %64 = tpu.reciprocal %63 {approx = true} : vector<32x1xf32> -> vector<32x1xf32>
    %65 = vector.broadcast %64 : vector<32x1xf32> to vector<32x8xf32>
    %66 = arith.mulf %61, %65 : vector<32x8xf32>
    %67 = arith.truncf %66 : vector<32x8xf32> to vector<32x8xbf16>
    %cst_30 = arith.constant dense<0.000000e+00> : vector<32x8xf32>
    %68 = tpu.matmul %67, %49, %cst_30 {dimension_numbers = #tpu.dot_dimension_numbers<[1], [0], [0], [1], [0, 0, 1, 1], [], []>} : vector<32x8xbf16>, vector<8x8xbf16>, vector<32x8xf32> -> vector<32x8xf32>
    %69 = vector.extract_strided_slice %68 {offsets = [0, 0], sizes = [8, 8], strides = [1, 1]} : vector<32x8xf32> to vector<8x8xf32>
    %70 = vector.extract_strided_slice %68 {offsets = [8, 0], sizes = [8, 8], strides = [1, 1]} : vector<32x8xf32> to vector<8x8xf32>
    %71 = vector.extract_strided_slice %68 {offsets = [16, 0], sizes = [8, 8], strides = [1, 1]} : vector<32x8xf32> to vector<8x8xf32>
    %72 = vector.extract_strided_slice %68 {offsets = [24, 0], sizes = [8, 8], strides = [1, 1]} : vector<32x8xf32> to vector<8x8xf32>
    %73 = tpu.concatenate %69, %70, %71, %72 in 1 : vector<8x8xf32>, vector<8x8xf32>, vector<8x8xf32>, vector<8x8xf32> -> vector<8x32xf32>
    %74 = arith.truncf %73 : vector<8x32xf32> to vector<8x32xbf16>
    %c0_31 = arith.constant 0 : index
    %c0_32 = arith.constant 0 : index
    %c0_33 = arith.constant 0 : index
    %75 = vector.load %arg11[%c0_31, %c0_32, %c0_33] : memref<1x32x32xbf16, #tpu.memory_space<vmem>>, vector<1x32x32xbf16>
    %76 = vector.shape_cast %75 : vector<1x32x32xbf16> to vector<32x32xbf16>
    %cst_34 = arith.constant dense<0.000000e+00> : vector<8x32xf32>
    %77 = tpu.matmul %74, %76, %cst_34 {dimension_numbers = #tpu.dot_dimension_numbers<[1], [0], [0], [1], [0, 0, 1, 1], [], []>} : vector<8x32xbf16>, vector<32x32xbf16>, vector<8x32xf32> -> vector<8x32xf32>
    %c0_35 = arith.constant 0 : index
    %c0_36 = arith.constant 0 : index
    %c0_37 = arith.constant 0 : index
    %78 = vector.load %arg12[%c0_35, %c0_36, %c0_37] : memref<1x1x32xf32, #tpu.memory_space<vmem>>, vector<1x1x32xf32>
    %79 = vector.shape_cast %78 : vector<1x1x32xf32> to vector<1x32xf32>
    %80 = vector.broadcast %79 : vector<1x32xf32> to vector<8x32xf32>
    %81 = arith.addf %77, %80 : vector<8x32xf32>
    %82 = arith.addf %4, %81 : vector<8x32xf32>
    %c0_38 = arith.constant 0 : index
    %c0_39 = arith.constant 0 : index
    %c0_40 = arith.constant 0 : index
    %83 = vector.load %arg13[%c0_38, %c0_39, %c0_40] : memref<1x1x32xf32, #tpu.memory_space<vmem>>, vector<1x1x32xf32>
    %84 = vector.shape_cast %83 : vector<1x1x32xf32> to vector<1x32xf32>
    %c0_41 = arith.constant 0 : index
    %c0_42 = arith.constant 0 : index
    %c0_43 = arith.constant 0 : index
    %85 = vector.load %arg14[%c0_41, %c0_42, %c0_43] : memref<1x1x32xf32, #tpu.memory_space<vmem>>, vector<1x1x32xf32>
    %86 = vector.shape_cast %85 : vector<1x1x32xf32> to vector<1x32xf32>
    %cst_44 = arith.constant dense<0.000000e+00> : vector<8xf32>
    %87 = vector.multi_reduction <add>, %82, %cst_44 [1] : vector<8x32xf32> to vector<8xf32>
    %88 = vector.shape_cast %87 : vector<8xf32> to vector<8x1xf32>
    %cst_45 = arith.constant 3.200000e+01 : f32
    %89 = vector.broadcast %cst_45 : f32 to vector<8x1xf32>
    %90 = arith.divf %88, %89 : vector<8x1xf32>
    %91 = vector.broadcast %90 : vector<8x1xf32> to vector<8x32xf32>
    %92 = arith.subf %82, %91 : vector<8x32xf32>
    %93 = arith.mulf %92, %92 : vector<8x32xf32>
    %cst_46 = arith.constant dense<0.000000e+00> : vector<8xf32>
    %94 = vector.multi_reduction <add>, %93, %cst_46 [1] : vector<8x32xf32> to vector<8xf32>
    %95 = vector.shape_cast %94 : vector<8xf32> to vector<8x1xf32>
    %cst_47 = arith.constant 3.200000e+01 : f32
    %96 = vector.broadcast %cst_47 : f32 to vector<8x1xf32>
    %97 = arith.divf %95, %96 : vector<8x1xf32>
    %98 = vector.broadcast %90 : vector<8x1xf32> to vector<8x32xf32>
    %99 = arith.subf %82, %98 : vector<8x32xf32>
    %cst_48 = arith.constant 9.99999974E-6 : f32
    %100 = vector.broadcast %cst_48 : f32 to vector<8x1xf32>
    %101 = arith.addf %97, %100 : vector<8x1xf32>
    %102 = math.rsqrt %101 : vector<8x1xf32>
    %103 = vector.broadcast %102 : vector<8x1xf32> to vector<8x32xf32>
    %104 = arith.mulf %99, %103 : vector<8x32xf32>
    %105 = vector.broadcast %84 : vector<1x32xf32> to vector<8x32xf32>
    %106 = arith.mulf %104, %105 : vector<8x32xf32>
    %107 = vector.broadcast %86 : vector<1x32xf32> to vector<8x32xf32>
    %108 = arith.addf %106, %107 : vector<8x32xf32>
    %109 = arith.truncf %108 : vector<8x32xf32> to vector<8x32xbf16>
    %c0_49 = arith.constant 0 : index
    %c0_50 = arith.constant 0 : index
    %c0_51 = arith.constant 0 : index
    %110 = vector.load %arg15[%c0_49, %c0_50, %c0_51] : memref<1x32x128xbf16, #tpu.memory_space<vmem>>, vector<1x32x128xbf16>
    %111 = vector.shape_cast %110 : vector<1x32x128xbf16> to vector<32x128xbf16>
    %cst_52 = arith.constant dense<0.000000e+00> : vector<8x128xf32>
    %112 = tpu.matmul %109, %111, %cst_52 {dimension_numbers = #tpu.dot_dimension_numbers<[1], [0], [0], [1], [0, 0, 1, 1], [], []>} : vector<8x32xbf16>, vector<32x128xbf16>, vector<8x128xf32> -> vector<8x128xf32>
    %c0_53 = arith.constant 0 : index
    %c0_54 = arith.constant 0 : index
    %c0_55 = arith.constant 0 : index
    %113 = vector.load %arg16[%c0_53, %c0_54, %c0_55] : memref<1x1x128xf32, #tpu.memory_space<vmem>>, vector<1x1x128xf32>
    %114 = vector.shape_cast %113 : vector<1x1x128xf32> to vector<1x128xf32>
    %115 = vector.broadcast %114 : vector<1x128xf32> to vector<8x128xf32>
    %116 = arith.addf %112, %115 : vector<8x128xf32>
    %117 = arith.mulf %116, %116 : vector<8x128xf32>
    %118 = arith.mulf %116, %117 : vector<8x128xf32>
    %cst_56 = arith.constant 4.471500e-02 : f32
    %119 = vector.broadcast %cst_56 : f32 to vector<8x128xf32>
    %120 = arith.mulf %119, %118 : vector<8x128xf32>
    %121 = arith.addf %116, %120 : vector<8x128xf32>
    %cst_57 = arith.constant 0.797884583 : f32
    %122 = vector.broadcast %cst_57 : f32 to vector<8x128xf32>
    %123 = arith.mulf %122, %121 : vector<8x128xf32>
    %124 = math.tanh %123 : vector<8x128xf32>
    %cst_58 = arith.constant 1.000000e+00 : f32
    %125 = vector.broadcast %cst_58 : f32 to vector<8x128xf32>
    %126 = arith.addf %125, %124 : vector<8x128xf32>
    %cst_59 = arith.constant 5.000000e-01 : f32
    %127 = vector.broadcast %cst_59 : f32 to vector<8x128xf32>
    %128 = arith.mulf %127, %126 : vector<8x128xf32>
    %129 = arith.mulf %116, %128 : vector<8x128xf32>
    %130 = arith.truncf %129 : vector<8x128xf32> to vector<8x128xbf16>
    %c0_60 = arith.constant 0 : index
    %c0_61 = arith.constant 0 : index
    %c0_62 = arith.constant 0 : index
    %131 = vector.load %arg17[%c0_60, %c0_61, %c0_62] : memref<1x128x32xbf16, #tpu.memory_space<vmem>>, vector<1x128x32xbf16>
    %132 = vector.shape_cast %131 : vector<1x128x32xbf16> to vector<128x32xbf16>
    %cst_63 = arith.constant dense<0.000000e+00> : vector<8x32xf32>
    %133 = tpu.matmul %130, %132, %cst_63 {dimension_numbers = #tpu.dot_dimension_numbers<[1], [0], [0], [1], [0, 0, 1, 1], [], []>} : vector<8x128xbf16>, vector<128x32xbf16>, vector<8x32xf32> -> vector<8x32xf32>
    %c0_64 = arith.constant 0 : index
    %c0_65 = arith.constant 0 : index
    %c0_66 = arith.constant 0 : index
    %134 = vector.load %arg18[%c0_64, %c0_65, %c0_66] : memref<1x1x32xf32, #tpu.memory_space<vmem>>, vector<1x1x32xf32>
    %135 = vector.shape_cast %134 : vector<1x1x32xf32> to vector<1x32xf32>
    %136 = vector.broadcast %135 : vector<1x32xf32> to vector<8x32xf32>
    %137 = arith.addf %133, %136 : vector<8x32xf32>
    %138 = arith.addf %82, %137 : vector<8x32xf32>
    %c0_67 = arith.constant 0 : index
    %c0_68 = arith.constant 0 : index
    %c0_69 = arith.constant 0 : index
    %139 = vector.load %arg19[%c0_67, %c0_68, %c0_69] : memref<1x8x32xf32, #tpu.memory_space<vmem>>, vector<1x8x32xf32>
    %140 = vector.shape_cast %139 : vector<1x8x32xf32> to vector<8x32xf32>
    %141 = vector.shape_cast %138 : vector<8x32xf32> to vector<1x8x32xf32>
    tpu.vector_store %arg19[%c0_67, %c0_68, %c0_69], %141 {strides = array<i32>} : memref<1x8x32xf32, #tpu.memory_space<vmem>>, vector<1x8x32xf32>,
    return
  }
  func.func @transform_0(%arg0: i32, %arg1: i32) -> (i32, i32, i32) {
    %c0_i32 = arith.constant 0 : i32
    %c0_i32_0 = arith.constant 0 : i32
    %c0_i32_1 = arith.constant 0 : i32
    return %arg0, %c0_i32, %c0_i32_0 : i32, i32, i32
  }
  func.func @transform_1(%arg0: i32, %arg1: i32) -> (i32, i32) {
    %c0_i32 = arith.constant 0 : i32
    %c0_i32_0 = arith.constant 0 : i32
    %c0_i32_1 = arith.constant 0 : i32
    return %c0_i32, %c0_i32_0 : i32, i32
  }
  func.func @transform_2(%arg0: i32, %arg1: i32) -> (i32, i32, i32) {
    %c0_i32 = arith.constant 0 : i32
    %c0_i32_0 = arith.constant 0 : i32
    %c0_i32_1 = arith.constant 0 : i32
    return %arg0, %c0_i32, %c0_i32_0 : i32, i32, i32
  }
  func.func @transform_3(%arg0: i32, %arg1: i32) -> (i32, i32, i32) {
    %c0_i32 = arith.constant 0 : i32
    %c0_i32_0 = arith.constant 0 : i32
    %c0_i32_1 = arith.constant 0 : i32
    return %arg1, %c0_i32, %c0_i32_0 : i32, i32, i32
  }
  func.func @transform_4(%arg0: i32, %arg1: i32) -> (i32, i32, i32) {
    %c0_i32 = arith.constant 0 : i32
    %c0_i32_0 = arith.constant 0 : i32
    %c0_i32_1 = arith.constant 0 : i32
    return %arg1, %c0_i32, %c0_i32_0 : i32, i32, i32
  }
  func.func @transform_5(%arg0: i32, %arg1: i32) -> (i32, i32, i32) {
    %c0_i32 = arith.constant 0 : i32
    %c0_i32_0 = arith.constant 0 : i32
    %c0_i32_1 = arith.constant 0 : i32
    return %arg1, %c0_i32, %c0_i32_0 : i32, i32, i32
  }
  func.func @transform_6(%arg0: i32, %arg1: i32) -> (i32, i32, i32) {
    %c0_i32 = arith.constant 0 : i32
    %c0_i32_0 = arith.constant 0 : i32
    %c0_i32_1 = arith.constant 0 : i32
    return %arg1, %c0_i32, %c0_i32_0 : i32, i32, i32
  }
  func.func @transform_7(%arg0: i32, %arg1: i32) -> (i32, i32, i32) {
    %c0_i32 = arith.constant 0 : i32
    %c0_i32_0 = arith.constant 0 : i32
    %c0_i32_1 = arith.constant 0 : i32
    return %arg1, %c0_i32, %c0_i32_0 : i32, i32, i32
  }
  func.func @transform_8(%arg0: i32, %arg1: i32) -> (i32, i32, i32) {
    %c0_i32 = arith.constant 0 : i32
    %c0_i32_0 = arith.constant 0 : i32
    %c0_i32_1 = arith.constant 0 : i32
    return %arg1, %c0_i32, %c0_i32_0 : i32, i32, i32
  }
  func.func @transform_9(%arg0: i32, %arg1: i32) -> (i32, i32, i32) {
    %c0_i32 = arith.constant 0 : i32
    %c0_i32_0 = arith.constant 0 : i32
    %c0_i32_1 = arith.constant 0 : i32
    return %arg1, %c0_i32, %c0_i32_0 : i32, i32, i32
  }
  func.func @transform_10(%arg0: i32, %arg1: i32) -> (i32, i32, i32) {
    %c0_i32 = arith.constant 0 : i32
    %c0_i32_0 = arith.constant 0 : i32
    %c0_i32_1 = arith.constant 0 : i32
    return %arg1, %c0_i32, %c0_i32_0 : i32, i32, i32
  }
  func.func @transform_11(%arg0: i32, %arg1: i32) -> (i32, i32, i32) {
    %c0_i32 = arith.constant 0 : i32
    %c0_i32_0 = arith.constant 0 : i32
    %c0_i32_1 = arith.constant 0 : i32
    return %arg1, %c0_i32, %c0_i32_0 : i32, i32, i32
  }
  func.func @transform_12(%arg0: i32, %arg1: i32) -> (i32, i32, i32) {
    %c0_i32 = arith.constant 0 : i32
    %c0_i32_0 = arith.constant 0 : i32
    %c0_i32_1 = arith.constant 0 : i32
    return %arg1, %c0_i32, %c0_i32_0 : i32, i32, i32
  }
  func.func @transform_13(%arg0: i32, %arg1: i32) -> (i32, i32, i32) {
    %c0_i32 = arith.constant 0 : i32
    %c0_i32_0 = arith.constant 0 : i32
    %c0_i32_1 = arith.constant 0 : i32
    return %arg1, %c0_i32, %c0_i32_0 : i32, i32, i32
  }
  func.func @transform_14(%arg0: i32, %arg1: i32) -> (i32, i32, i32) {
    %c0_i32 = arith.constant 0 : i32
    %c0_i32_0 = arith.constant 0 : i32
    %c0_i32_1 = arith.constant 0 : i32
    return %arg1, %c0_i32, %c0_i32_0 : i32, i32, i32
  }
  func.func @transform_15(%arg0: i32, %arg1: i32) -> (i32, i32, i32) {
    %c0_i32 = arith.constant 0 : i32
    %c0_i32_0 = arith.constant 0 : i32
    %c0_i32_1 = arith.constant 0 : i32
    return %arg1, %c0_i32, %c0_i32_0 : i32, i32, i32
  }
  func.func @transform_16(%arg0: i32, %arg1: i32) -> (i32, i32, i32) {
    %c0_i32 = arith.constant 0 : i32
    %c0_i32_0 = arith.constant 0 : i32
    %c0_i32_1 = arith.constant 0 : i32
    return %arg1, %c0_i32, %c0_i32_0 : i32, i32, i32
  }
  func.func @transform_17(%arg0: i32, %arg1: i32) -> (i32, i32, i32) {
    %c0_i32 = arith.constant 0 : i32
    %c0_i32_0 = arith.constant 0 : i32
    %c0_i32_1 = arith.constant 0 : i32
    return %arg0, %c0_i32, %c0_i32_0 : i32, i32, i32
  }
}

</mosaic_0001>

<llo_original>
// kernel: transformer_forward.1
$region0: #{transformer_forward.1}
  #allocation0 [shape = 'u32[]', space=smem, size = 0x4, offset = 0x4, fixed_abs, tag = 'smem constant byte address 0x4 - core index']
  #allocation1 [shape = 'u32[144,128]{1,0:T(1,128)}', space=vmem, size = 0x12000, scoped, tag = 'internal scratch']
  %s0 = inlined_call_operand.hbm [shape: f32[2,8,32], index: 0, kind: input, shape index: {}]
  %s1 = inlined_call_operand.hbm [shape: f32[8,32], index: 1, kind: input, shape index: {}]
  %s2 = inlined_call_operand.hbm [shape: f32[2,1,32], index: 2, kind: input, shape index: {}]
  %s3 = inlined_call_operand.hbm [shape: f32[2,1,32], index: 3, kind: input, shape index: {}]
  %s4 = inlined_call_operand.hbm [shape: f32[2,1,32], index: 4, kind: input, shape index: {}]
  %s5 = inlined_call_operand.hbm [shape: bf16[2,32,32], index: 5, kind: input, shape index: {}]
  %s6 = inlined_call_operand.hbm [shape: f32[2,1,32], index: 6, kind: input, shape index: {}]
  %s7 = inlined_call_operand.hbm [shape: bf16[2,32,16], index: 7, kind: input, shape index: {}]
  %s8 = inlined_call_operand.hbm [shape: f32[2,1,16], index: 8, kind: input, shape index: {}]
  %s9 = inlined_call_operand.hbm [shape: bf16[2,32,32], index: 9, kind: input, shape index: {}]
  %s10 = inlined_call_operand.hbm [shape: f32[2,1,32], index: 10, kind: input, shape index: {}]
  %s11 = inlined_call_operand.hbm [shape: f32[2,1,32], index: 11, kind: input, shape index: {}]
  %s12 = inlined_call_operand.hbm [shape: f32[2,1,32], index: 12, kind: input, shape index: {}]
  %s13 = inlined_call_operand.hbm [shape: bf16[2,32,128], index: 13, kind: input, shape index: {}]
  %s14 = inlined_call_operand.hbm [shape: f32[2,1,128], index: 14, kind: input, shape index: {}]
  %s15 = inlined_call_operand.hbm [shape: bf16[2,128,32], index: 15, kind: input, shape index: {}]
  %s16 = inlined_call_operand.hbm [shape: f32[2,1,32], index: 16, kind: input, shape index: {}]
  %s17 = inlined_call_operand.hbm [shape: f32[2,8,32], index: 17, kind: output, shape index: {}]
  %s18 = sld [smem:[#allocation0]]
  $region173: #{transformer_forward.1} parent=0
    _
  %s20 = ssub.s32 1, %s18
  %s21 = scalar_select 0, %s20, %s18
  $region1: #{transformer_forward.1} parent=0
    #allocation2 [shape = 'u8[8192]{0}', space=vmem, size = 0x2000, scoped, tag = 'input window, operand 0']
    #allocation3 [shape = 's32[2]{0}', space=sflag, size = 0x8, scoped, tag = 'scoped memory for transformer_forward.1']
    #allocation4 [shape = 's32[2]{0}', space=sflag, size = 0x8, scoped, tag = 'scoped memory for transformer_forward.1']
    #allocation5 [shape = 'u8[4096]{0}', space=vmem, size = 0x1000, scoped, tag = 'input window, operand 1, single buffered']
    #allocation6 [shape = 's32[1]{0}', space=sflag, size = 0x4, scoped, tag = 'scoped memory for transformer_forward.1']
    #allocation7 [shape = 'u8[1024]{0}', space=vmem, size = 0x400, scoped, tag = 'input window, operand 2']
    #allocation8 [shape = 'u8[1024]{0}', space=vmem, size = 0x400, scoped, tag = 'input window, operand 3']
    #allocation9 [shape = 'u8[1024]{0}', space=vmem, size = 0x400, scoped, tag = 'input window, operand 4']
    #allocation10 [shape = 'u8[16384]{0}', space=vmem, size = 0x4000, scoped, tag = 'input window, operand 5']
    #allocation11 [shape = 'u8[1024]{0}', space=vmem, size = 0x400, scoped, tag = 'input window, operand 6']
    #allocation12 [shape = 'u8[16384]{0}', space=vmem, size = 0x4000, scoped, tag = 'input window, operand 7']
    #allocation13 [shape = 'u8[1024]{0}', space=vmem, size = 0x400, scoped, tag = 'input window, operand 8']
    #allocation14 [shape = 'u8[16384]{0}', space=vmem, size = 0x4000, scoped, tag = 'input window, operand 9']
    #allocation15 [shape = 'u8[1024]{0}', space=vmem, size = 0x400, scoped, tag = 'input window, operand 10']
    #allocation16 [shape = 'u8[1024]{0}', space=vmem, size = 0x400, scoped, tag = 'input window, operand 11']
    #allocation17 [shape = 'u8[1024]{0}', space=vmem, size = 0x400, scoped, tag = 'input window, operand 12']
    #allocation18 [shape = 'u8[16384]{0}', space=vmem, size = 0x4000, scoped, tag = 'input window, operand 13']
    #allocation19 [shape = 'u8[1024]{0}', space=vmem, size = 0x400, scoped, tag = 'input window, operand 14']
    #allocation20 [shape = 'u8[65536]{0}', space=vmem, size = 0x10000, scoped, tag = 'input window, operand 15']
    #allocation21 [shape = 'u8[1024]{0}', space=vmem, size = 0x400, scoped, tag = 'input window, operand 16']
    #allocation22 [shape = 'u8[8192]{0}', space=vmem, size = 0x2000, scoped, tag = 'output window, operand 0']
    %22 = vsyncpa [#allocation3], 0
    %s23 = scalar_lea.sflag [#allocation3], 1
    %24 = vsyncpa %s23, 0
    %25 = vsyncpa [#allocation6], 0
    %26 = vsyncpa [#allocation4], 0
    %s27 = scalar_lea.sflag [#allocation4], 1
    %28 = vsyncpa %s27, 0
    loop: start=0, step=1, limit=6
    $region2: #{transformer_forward.1} parent=1 // loop_pre_header
      _
    $region3: #{transformer_forward.1} parent=1 // loop_header
      %s30 = sphi 0, %s34
      %p31 = scmp.ge.s32.totalorder %s30, 6
      %s37 = sphi 0, %s49
      %s38 = sphi 0, %s45
      %s39 = sphi 0, %s37
      %s40 = sphi 0, %s38
      %s41 = sphi 0, %s39
      %s42 = sphi 0, %s40
      %s52 = sphi 0, %s54
      %s55 = sphi 0, %s52
      %s56 = sphi 0, %s55
      %s72 = sphi 0, %s56
      %s76 = sphi 0, %s76
      %s78 = sphi 0, %s76
      %s79 = sphi 0, %s78
      %s93 = sphi 0, %s79
      %s99 = sphi 0, %s101
      %s102 = sphi 0, %s99
      %s103 = sphi 0, %s102
      %s119 = sphi 0, %s103
      %s125 = sphi 0, %s127
      %s128 = sphi 0, %s125
      %s129 = sphi 0, %s128
      %s145 = sphi 0, %s129
      %s151 = sphi 0, %s153
      %s154 = sphi 0, %s151
      %s155 = sphi 0, %s154
      %s171 = sphi 0, %s155
      %s177 = sphi 0, %s179
      %s180 = sphi 0, %s177
      %s181 = sphi 0, %s180
      %s197 = sphi 0, %s181
      %s203 = sphi 0, %s205
      %s206 = sphi 0, %s203
      %s207 = sphi 0, %s206
      %s223 = sphi 0, %s207
      %s229 = sphi 0, %s231
      %s232 = sphi 0, %s229
      %s233 = sphi 0, %s232
      %s249 = sphi 0, %s233
      %s255 = sphi 0, %s257
      %s258 = sphi 0, %s255
      %s259 = sphi 0, %s258
      %s275 = sphi 0, %s259
      %s281 = sphi 0, %s283
      %s284 = sphi 0, %s281
      %s285 = sphi 0, %s284
      %s301 = sphi 0, %s285
      %s307 = sphi 0, %s309
      %s310 = sphi 0, %s307
      %s311 = sphi 0, %s310
      %s327 = sphi 0, %s311
      %s333 = sphi 0, %s335
      %s336 = sphi 0, %s333
      %s337 = sphi 0, %s336
      %s353 = sphi 0, %s337
      %s359 = sphi 0, %s361
      %s362 = sphi 0, %s359
      %s363 = sphi 0, %s362
      %s379 = sphi 0, %s363
      %s385 = sphi 0, %s387
      %s388 = sphi 0, %s385
      %s389 = sphi 0, %s388
      %s405 = sphi 0, %s389
      %s411 = sphi 0, %s413
      %s414 = sphi 0, %s411
      %s415 = sphi 0, %s414
      %s431 = sphi 0, %s415
      %s437 = sphi 0, %s439
      %s440 = sphi 0, %s437
      %s441 = sphi 0, %s440
      %s457 = sphi 0, %s441
      %s463 = sphi 0, %s465
      %s466 = sphi 0, %s463
      %s467 = sphi 0, %s466
      %s483 = sphi 0, %s467
      %s489 = sphi 0, %s491
      %s492 = sphi 0, %s489
      %s493 = sphi 0, %s492
      %s509 = sphi 0, %s493
    $region4: #{transformer_forward.1} parent=1 // loop_header_branch
      %33 = sbr.rel (%p31) target = $region8
    $region5: #{transformer_forward.1} parent=1 // loop_body
      %s35 = ssub.s32 %s30, 1
      %s36 = ssub.s32 %s30, 2
      %s43 = sadd.s32 1, %s38
      %p44 = scmp.ge.s32.totalorder %s43, 2
      %s45 = scalar_select %p44, 0, %s43
      %s46 = sadd.s32 1, %s37
      %s47 = scalar_select %p44, %s46, %s37
      %p48 = scmp.ge.s32.totalorder %s47, 2
      %s49 = scalar_select %p48, 0, %s47
      %s50 = ssub.s32 %s37, %s49
      %p51 = scmp.eq.s32.totalorder %s50, 0
      %s53 = sadd.s32 %s52, 1
      %s54 = scalar_select %p51, %s52, %s53
      %p57 = pneg %p51
      %p58 = scmp.eq.s32.totalorder %s30, 3
      %p59 = por %p57, %p58
      %p60 = scmp.ne.s32.totalorder %s52, %s55
      %p61 = scmp.eq.s32.totalorder %s30, 0
      %p62 = por %p60, %p61
      %p63 = scmp.ne.s32.totalorder %s52, %s55
      %p64 = scmp.eq.s32.totalorder %s35, 3
      %p65 = por %p63, %p64
      %p66 = scmp.ne.s32.totalorder %s55, %s56
      %p67 = scmp.eq.s32.totalorder %s35, 0
      %p68 = por %p66, %p67
      %p69 = scmp.ne.s32.totalorder %s55, %s56
      %p70 = scmp.eq.s32.totalorder %s36, 3
      %p71 = por %p69, %p70
      %p73 = scmp.ne.s32.totalorder %s56, %s72
      %p74 = scmp.eq.s32.totalorder %s36, 0
      %p75 = por %p73, %p74
      %s77 = sadd.s32 %s76, 1
      %p80 = scmp.eq.s32.totalorder %s30, 3
      %p81 = scmp.ne.s32.totalorder %s76, %s78
      %p82 = scmp.eq.s32.totalorder %s30, 0
      %p83 = por %p81, %p82
      %p84 = scmp.ne.s32.totalorder %s76, %s78
      %p85 = scmp.eq.s32.totalorder %s35, 3
      %p86 = por %p84, %p85
      %p87 = scmp.ne.s32.totalorder %s78, %s79
      %p88 = scmp.eq.s32.totalorder %s35, 0
      %p89 = por %p87, %p88
      %p90 = scmp.ne.s32.totalorder %s78, %s79
      %p91 = scmp.eq.s32.totalorder %s36, 3
      %p92 = por %p90, %p91
      %p94 = scmp.ne.s32.totalorder %s79, %s93
      %p95 = scmp.eq.s32.totalorder %s36, 0
      %p96 = por %p94, %p95
      %s97 = ssub.s32 %s37, %s49
      %p98 = scmp.eq.s32.totalorder %s97, 0
      %s100 = sadd.s32 %s99, 1
      %s101 = scalar_select %p98, %s99, %s100
      %p104 = pneg %p98
      %p105 = scmp.eq.s32.totalorder %s30, 3
      %p106 = por %p104, %p105
      %p107 = scmp.ne.s32.totalorder %s99, %s102
      %p108 = scmp.eq.s32.totalorder %s30, 0
      %p109 = por %p107, %p108
      %p110 = scmp.ne.s32.totalorder %s99, %s102
      %p111 = scmp.eq.s32.totalorder %s35, 3
      %p112 = por %p110, %p111
      %p113 = scmp.ne.s32.totalorder %s102, %s103
      %p114 = scmp.eq.s32.totalorder %s35, 0
      %p115 = por %p113, %p114
      %p116 = scmp.ne.s32.totalorder %s102, %s103
      %p117 = scmp.eq.s32.totalorder %s36, 3
      %p118 = por %p116, %p117
      %p120 = scmp.ne.s32.totalorder %s103, %s119
      %p121 = scmp.eq.s32.totalorder %s36, 0
      %p122 = por %p120, %p121
      %s123 = ssub.s32 %s38, %s45
      %p124 = scmp.eq.s32.totalorder %s123, 0
      %s126 = sadd.s32 %s125, 1
      %s127 = scalar_select %p124, %s125, %s126
      %p130 = pneg %p124
      %p131 = scmp.eq.s32.totalorder %s30, 3
      %p132 = por %p130, %p131
      %p133 = scmp.ne.s32.totalorder %s125, %s128
      %p134 = scmp.eq.s32.totalorder %s30, 0
      %p135 = por %p133, %p134
      %p136 = scmp.ne.s32.totalorder %s125, %s128
      %p137 = scmp.eq.s32.totalorder %s35, 3
      %p138 = por %p136, %p137
      %p139 = scmp.ne.s32.totalorder %s128, %s129
      %p140 = scmp.eq.s32.totalorder %s35, 0
      %p141 = por %p139, %p140
      %p142 = scmp.ne.s32.totalorder %s128, %s129
      %p143 = scmp.eq.s32.totalorder %s36, 3
      %p144 = por %p142, %p143
      %p146 = scmp.ne.s32.totalorder %s129, %s145
      %p147 = scmp.eq.s32.totalorder %s36, 0
      %p148 = por %p146, %p147
      %s149 = ssub.s32 %s38, %s45
      %p150 = scmp.eq.s32.totalorder %s149, 0
      %s152 = sadd.s32 %s151, 1
      %s153 = scalar_select %p150, %s151, %s152
      %p156 = pneg %p150
      %p157 = scmp.eq.s32.totalorder %s30, 3
      %p158 = por %p156, %p157
      %p159 = scmp.ne.s32.totalorder %s151, %s154
      %p160 = scmp.eq.s32.totalorder %s30, 0
      %p161 = por %p159, %p160
      %p162 = scmp.ne.s32.totalorder %s151, %s154
      %p163 = scmp.eq.s32.totalorder %s35, 3
      %p164 = por %p162, %p163
      %p165 = scmp.ne.s32.totalorder %s154, %s155
      %p166 = scmp.eq.s32.totalorder %s35, 0
      %p167 = por %p165, %p166
      %p168 = scmp.ne.s32.totalorder %s154, %s155
      %p169 = scmp.eq.s32.totalorder %s36, 3
      %p170 = por %p168, %p169
      %p172 = scmp.ne.s32.totalorder %s155, %s171
      %p173 = scmp.eq.s32.totalorder %s36, 0
      %p174 = por %p172, %p173
      %s175 = ssub.s32 %s38, %s45
      %p176 = scmp.eq.s32.totalorder %s175, 0
      %s178 = sadd.s32 %s177, 1
      %s179 = scalar_select %p176, %s177, %s178
      %p182 = pneg %p176
      %p183 = scmp.eq.s32.totalorder %s30, 3
      %p184 = por %p182, %p183
      %p185 = scmp.ne.s32.totalorder %s177, %s180
      %p186 = scmp.eq.s32.totalorder %s30, 0
      %p187 = por %p185, %p186
      %p188 = scmp.ne.s32.totalorder %s177, %s180
      %p189 = scmp.eq.s32.totalorder %s35, 3
      %p190 = por %p188, %p189
      %p191 = scmp.ne.s32.totalorder %s180, %s181
      %p192 = scmp.eq.s32.totalorder %s35, 0
      %p193 = por %p191, %p192
      %p194 = scmp.ne.s32.totalorder %s180, %s181
      %p195 = scmp.eq.s32.totalorder %s36, 3
      %p196 = por %p194, %p195
      %p198 = scmp.ne.s32.totalorder %s181, %s197
      %p199 = scmp.eq.s32.totalorder %s36, 0
      %p200 = por %p198, %p199
      %s201 = ssub.s32 %s38, %s45
      %p202 = scmp.eq.s32.totalorder %s201, 0
      %s204 = sadd.s32 %s203, 1
      %s205 = scalar_select %p202, %s203, %s204
      %p208 = pneg %p202
      %p209 = scmp.eq.s32.totalorder %s30, 3
      %p210 = por %p208, %p209
      %p211 = scmp.ne.s32.totalorder %s203, %s206
      %p212 = scmp.eq.s32.totalorder %s30, 0
      %p213 = por %p211, %p212
      %p214 = scmp.ne.s32.totalorder %s203, %s206
      %p215 = scmp.eq.s32.totalorder %s35, 3
      %p216 = por %p214, %p215
      %p217 = scmp.ne.s32.totalorder %s206, %s207
      %p218 = scmp.eq.s32.totalorder %s35, 0
      %p219 = por %p217, %p218
      %p220 = scmp.ne.s32.totalorder %s206, %s207
      %p221 = scmp.eq.s32.totalorder %s36, 3
      %p222 = por %p220, %p221
      %p224 = scmp.ne.s32.totalorder %s207, %s223
      %p225 = scmp.eq.s32.totalorder %s36, 0
      %p226 = por %p224, %p225
      %s227 = ssub.s32 %s38, %s45
      %p228 = scmp.eq.s32.totalorder %s227, 0
      %s230 = sadd.s32 %s229, 1
      %s231 = scalar_select %p228, %s229, %s230
      %p234 = pneg %p228
      %p235 = scmp.eq.s32.totalorder %s30, 3
      %p236 = por %p234, %p235
      %p237 = scmp.ne.s32.totalorder %s229, %s232
      %p238 = scmp.eq.s32.totalorder %s30, 0
      %p239 = por %p237, %p238
      %p240 = scmp.ne.s32.totalorder %s229, %s232
      %p241 = scmp.eq.s32.totalorder %s35, 3
      %p242 = por %p240, %p241
      %p243 = scmp.ne.s32.totalorder %s232, %s233
      %p244 = scmp.eq.s32.totalorder %s35, 0
      %p245 = por %p243, %p244
      %p246 = scmp.ne.s32.totalorder %s232, %s233
      %p247 = scmp.eq.s32.totalorder %s36, 3
      %p248 = por %p246, %p247
      %p250 = scmp.ne.s32.totalorder %s233, %s249
      %p251 = scmp.eq.s32.totalorder %s36, 0
      %p252 = por %p250, %p251
      %s253 = ssub.s32 %s38, %s45
      %p254 = scmp.eq.s32.totalorder %s253, 0
      %s256 = sadd.s32 %s255, 1
      %s257 = scalar_select %p254, %s255, %s256
      %p260 = pneg %p254
      %p261 = scmp.eq.s32.totalorder %s30, 3
      %p262 = por %p260, %p261
      %p263 = scmp.ne.s32.totalorder %s255, %s258
      %p264 = scmp.eq.s32.totalorder %s30, 0
      %p265 = por %p263, %p264
      %p266 = scmp.ne.s32.totalorder %s255, %s258
      %p267 = scmp.eq.s32.totalorder %s35, 3
      %p268 = por %p266, %p267
      %p269 = scmp.ne.s32.totalorder %s258, %s259
      %p270 = scmp.eq.s32.totalorder %s35, 0
      %p271 = por %p269, %p270
      %p272 = scmp.ne.s32.totalorder %s258, %s259
      %p273 = scmp.eq.s32.totalorder %s36, 3
      %p274 = por %p272, %p273
      %p276 = scmp.ne.s32.totalorder %s259, %s275
      %p277 = scmp.eq.s32.totalorder %s36, 0
      %p278 = por %p276, %p277
      %s279 = ssub.s32 %s38, %s45
      %p280 = scmp.eq.s32.totalorder %s279, 0
      %s282 = sadd.s32 %s281, 1
      %s283 = scalar_select %p280, %s281, %s282
      %p286 = pneg %p280
      %p287 = scmp.eq.s32.totalorder %s30, 3
      %p288 = por %p286, %p287
      %p289 = scmp.ne.s32.totalorder %s281, %s284
      %p290 = scmp.eq.s32.totalorder %s30, 0
      %p291 = por %p289, %p290
      %p292 = scmp.ne.s32.totalorder %s281, %s284
      %p293 = scmp.eq.s32.totalorder %s35, 3
      %p294 = por %p292, %p293
      %p295 = scmp.ne.s32.totalorder %s284, %s285
      %p296 = scmp.eq.s32.totalorder %s35, 0
      %p297 = por %p295, %p296
      %p298 = scmp.ne.s32.totalorder %s284, %s285
      %p299 = scmp.eq.s32.totalorder %s36, 3
      %p300 = por %p298, %p299
      %p302 = scmp.ne.s32.totalorder %s285, %s301
      %p303 = scmp.eq.s32.totalorder %s36, 0
      %p304 = por %p302, %p303
      %s305 = ssub.s32 %s38, %s45
      %p306 = scmp.eq.s32.totalorder %s305, 0
      %s308 = sadd.s32 %s307, 1
      %s309 = scalar_select %p306, %s307, %s308
      %p312 = pneg %p306
      %p313 = scmp.eq.s32.totalorder %s30, 3
      %p314 = por %p312, %p313
      %p315 = scmp.ne.s32.totalorder %s307, %s310
      %p316 = scmp.eq.s32.totalorder %s30, 0
      %p317 = por %p315, %p316
      %p318 = scmp.ne.s32.totalorder %s307, %s310
      %p319 = scmp.eq.s32.totalorder %s35, 3
      %p320 = por %p318, %p319
      %p321 = scmp.ne.s32.totalorder %s310, %s311
      %p322 = scmp.eq.s32.totalorder %s35, 0
      %p323 = por %p321, %p322
      %p324 = scmp.ne.s32.totalorder %s310, %s311
      %p325 = scmp.eq.s32.totalorder %s36, 3
      %p326 = por %p324, %p325
      %p328 = scmp.ne.s32.totalorder %s311, %s327
      %p329 = scmp.eq.s32.totalorder %s36, 0
      %p330 = por %p328, %p329
      %s331 = ssub.s32 %s38, %s45
      %p332 = scmp.eq.s32.totalorder %s331, 0
      %s334 = sadd.s32 %s333, 1
      %s335 = scalar_select %p332, %s333, %s334
      %p338 = pneg %p332
      %p339 = scmp.eq.s32.totalorder %s30, 3
      %p340 = por %p338, %p339
      %p341 = scmp.ne.s32.totalorder %s333, %s336
      %p342 = scmp.eq.s32.totalorder %s30, 0
      %p343 = por %p341, %p342
      %p344 = scmp.ne.s32.totalorder %s333, %s336
      %p345 = scmp.eq.s32.totalorder %s35, 3
      %p346 = por %p344, %p345
      %p347 = scmp.ne.s32.totalorder %s336, %s337
      %p348 = scmp.eq.s32.totalorder %s35, 0
      %p349 = por %p347, %p348
      %p350 = scmp.ne.s32.totalorder %s336, %s337
      %p351 = scmp.eq.s32.totalorder %s36, 3
      %p352 = por %p350, %p351
      %p354 = scmp.ne.s32.totalorder %s337, %s353
      %p355 = scmp.eq.s32.totalorder %s36, 0
      %p356 = por %p354, %p355
      %s357 = ssub.s32 %s38, %s45
      %p358 = scmp.eq.s32.totalorder %s357, 0
      %s360 = sadd.s32 %s359, 1
      %s361 = scalar_select %p358, %s359, %s360
      %p364 = pneg %p358
      %p365 = scmp.eq.s32.totalorder %s30, 3
      %p366 = por %p364, %p365
      %p367 = scmp.ne.s32.totalorder %s359, %s362
      %p368 = scmp.eq.s32.totalorder %s30, 0
      %p369 = por %p367, %p368
      %p370 = scmp.ne.s32.totalorder %s359, %s362
      %p371 = scmp.eq.s32.totalorder %s35, 3
      %p372 = por %p370, %p371
      %p373 = scmp.ne.s32.totalorder %s362, %s363
      %p374 = scmp.eq.s32.totalorder %s35, 0
      %p375 = por %p373, %p374
      %p376 = scmp.ne.s32.totalorder %s362, %s363
      %p377 = scmp.eq.s32.totalorder %s36, 3
      %p378 = por %p376, %p377
      %p380 = scmp.ne.s32.totalorder %s363, %s379
      %p381 = scmp.eq.s32.totalorder %s36, 0
      %p382 = por %p380, %p381
      %s383 = ssub.s32 %s38, %s45
      %p384 = scmp.eq.s32.totalorder %s383, 0
      %s386 = sadd.s32 %s385, 1
      %s387 = scalar_select %p384, %s385, %s386
      %p390 = pneg %p384
      %p391 = scmp.eq.s32.totalorder %s30, 3
      %p392 = por %p390, %p391
      %p393 = scmp.ne.s32.totalorder %s385, %s388
      %p394 = scmp.eq.s32.totalorder %s30, 0
      %p395 = por %p393, %p394
      %p396 = scmp.ne.s32.totalorder %s385, %s388
      %p397 = scmp.eq.s32.totalorder %s35, 3
      %p398 = por %p396, %p397
      %p399 = scmp.ne.s32.totalorder %s388, %s389
      %p400 = scmp.eq.s32.totalorder %s35, 0
      %p401 = por %p399, %p400
      %p402 = scmp.ne.s32.totalorder %s388, %s389
      %p403 = scmp.eq.s32.totalorder %s36, 3
      %p404 = por %p402, %p403
      %p406 = scmp.ne.s32.totalorder %s389, %s405
      %p407 = scmp.eq.s32.totalorder %s36, 0
      %p408 = por %p406, %p407
      %s409 = ssub.s32 %s38, %s45
      %p410 = scmp.eq.s32.totalorder %s409, 0
      %s412 = sadd.s32 %s411, 1
      %s413 = scalar_select %p410, %s411, %s412
      %p416 = pneg %p410
      %p417 = scmp.eq.s32.totalorder %s30, 3
      %p418 = por %p416, %p417
      %p419 = scmp.ne.s32.totalorder %s411, %s414
      %p420 = scmp.eq.s32.totalorder %s30, 0
      %p421 = por %p419, %p420
      %p422 = scmp.ne.s32.totalorder %s411, %s414
      %p423 = scmp.eq.s32.totalorder %s35, 3
      %p424 = por %p422, %p423
      %p425 = scmp.ne.s32.totalorder %s414, %s415
      %p426 = scmp.eq.s32.totalorder %s35, 0
      %p427 = por %p425, %p426
      %p428 = scmp.ne.s32.totalorder %s414, %s415
      %p429 = scmp.eq.s32.totalorder %s36, 3
      %p430 = por %p428, %p429
      %p432 = scmp.ne.s32.totalorder %s415, %s431
      %p433 = scmp.eq.s32.totalorder %s36, 0
      %p434 = por %p432, %p433
      %s435 = ssub.s32 %s38, %s45
      %p436 = scmp.eq.s32.totalorder %s435, 0
      %s438 = sadd.s32 %s437, 1
      %s439 = scalar_select %p436, %s437, %s438
      %p442 = pneg %p436
      %p443 = scmp.eq.s32.totalorder %s30, 3
      %p444 = por %p442, %p443
      %p445 = scmp.ne.s32.totalorder %s437, %s440
      %p446 = scmp.eq.s32.totalorder %s30, 0
      %p447 = por %p445, %p446
      %p448 = scmp.ne.s32.totalorder %s437, %s440
      %p449 = scmp.eq.s32.totalorder %s35, 3
      %p450 = por %p448, %p449
      %p451 = scmp.ne.s32.totalorder %s440, %s441
      %p452 = scmp.eq.s32.totalorder %s35, 0
      %p453 = por %p451, %p452
      %p454 = scmp.ne.s32.totalorder %s440, %s441
      %p455 = scmp.eq.s32.totalorder %s36, 3
      %p456 = por %p454, %p455
      %p458 = scmp.ne.s32.totalorder %s441, %s457
      %p459 = scmp.eq.s32.totalorder %s36, 0
      %p460 = por %p458, %p459
      %s461 = ssub.s32 %s38, %s45
      %p462 = scmp.eq.s32.totalorder %s461, 0
      %s464 = sadd.s32 %s463, 1
      %s465 = scalar_select %p462, %s463, %s464
      %p468 = pneg %p462
      %p469 = scmp.eq.s32.totalorder %s30, 3
      %p470 = por %p468, %p469
      %p471 = scmp.ne.s32.totalorder %s463, %s466
      %p472 = scmp.eq.s32.totalorder %s30, 0
      %p473 = por %p471, %p472
      %p474 = scmp.ne.s32.totalorder %s463, %s466
      %p475 = scmp.eq.s32.totalorder %s35, 3
      %p476 = por %p474, %p475
      %p477 = scmp.ne.s32.totalorder %s466, %s467
      %p478 = scmp.eq.s32.totalorder %s35, 0
      %p479 = por %p477, %p478
      %p480 = scmp.ne.s32.totalorder %s466, %s467
      %p481 = scmp.eq.s32.totalorder %s36, 3
      %p482 = por %p480, %p481
      %p484 = scmp.ne.s32.totalorder %s467, %s483
      %p485 = scmp.eq.s32.totalorder %s36, 0
      %p486 = por %p484, %p485
      %s487 = ssub.s32 %s37, %s49
      %p488 = scmp.eq.s32.totalorder %s487, 0
      %s490 = sadd.s32 %s489, 1
      %s491 = scalar_select %p488, %s489, %s490
      %p494 = pneg %p488
      %p495 = scmp.eq.s32.totalorder %s30, 3
      %p496 = por %p494, %p495
      %p497 = scmp.ne.s32.totalorder %s489, %s492
      %p498 = scmp.eq.s32.totalorder %s30, 0
      %p499 = por %p497, %p498
      %p500 = scmp.ne.s32.totalorder %s489, %s492
      %p501 = scmp.eq.s32.totalorder %s35, 3
      %p502 = por %p500, %p501
      %p503 = scmp.ne.s32.totalorder %s492, %s493
      %p504 = scmp.eq.s32.totalorder %s35, 0
      %p505 = por %p503, %p504
      %p506 = scmp.ne.s32.totalorder %s492, %s493
      %p507 = scmp.eq.s32.totalorder %s36, 3
      %p508 = por %p506, %p507
      %p510 = scmp.ne.s32.totalorder %s493, %s509
      %p511 = scmp.eq.s32.totalorder %s36, 0
      %p512 = por %p510, %p511
      %p513 = scmp.le.s32.totalorder 1, %s30
      %p514 = scmp.lt.s32.totalorder %s30, 5
      %p515 = pnand %p513, %p514
      %p516 = pneg %p515
      // Predicated region
      $region9: #{transformer_forward.1} parent=5 // pred_check
        _
      $region10: #{transformer_forward.1} parent=5 // pred_check_branch
        %518 = sbr.rel (%p515) target = $region12
      $region11: #{transformer_forward.1} parent=5 // pred_region
        %s519 = ssub.s32 %s30, 1
        // Predicated region
        $region13: #{transformer_forward.1} parent=11 // pred_check
          %p520 = pneg %p89
        $region14: #{transformer_forward.1} parent=11 // pred_check_branch
          %522 = sbr.rel (%p520) target = $region16
        $region15: #{transformer_forward.1} parent=11 // pred_region
          %s524 = ssub.s32 128, 128
          %525 = vsyncadd [#allocation6], %s524
          %s527 = sshll.u32 [#allocation5], 4
          %s528 = int_to_ptr.vmem [resolvable:$true] %s527
          %530 = dma.hbm_to_vmem [thread:$0]  %s1, 128, %s528, [#allocation6]
        $region16: #{transformer_forward.1} parent=11 // pred_fallthru
          _
      $region12: #{transformer_forward.1} parent=5 // pred_fallthru
        _
      %p531 = scmp.lt.s32.totalorder %s30, 4
      // Predicated region
      $region17: #{transformer_forward.1} parent=5 // pred_check
        %p532 = pneg %p531
      $region18: #{transformer_forward.1} parent=5 // pred_check_branch
        %534 = sbr.rel (%p532) target = $region20
      $region19: #{transformer_forward.1} parent=5 // pred_region
        // Predicated region
        $region21: #{transformer_forward.1} parent=19 // pred_check
          %p535 = pneg %p62
        $region22: #{transformer_forward.1} parent=19 // pred_check_branch
          %537 = sbr.rel (%p535) target = $region24
        $region23: #{transformer_forward.1} parent=19 // pred_region
          %s538 = sand.u32 %s30, 1
          %s539 = scalar_lea.sflag [#allocation3], %s538
          %s540 = sand.u32 %s52, 1
          %s541 = smul.addr %s540, 8
          %s542 = scalar_lea.vmem [#allocation2], %s541
          %s544 = ssub.s32 128, 128
          %545 = vsyncadd %s539, %s544
          %s546 = smul.addr %s37, 128
          %s547 = scalar_lea.hbm %s0, %s546
          %s549 = sshll.u32 %s542, 4
          %s550 = int_to_ptr.vmem [resolvable:$true] %s549
          %552 = dma.hbm_to_vmem [thread:$0]  %s547, 128, %s550, %s539
        $region24: #{transformer_forward.1} parent=19 // pred_fallthru
          _
        // Predicated region
        $region25: #{transformer_forward.1} parent=19 // pred_check
          %p553 = pneg %p109
        $region26: #{transformer_forward.1} parent=19 // pred_check_branch
          %555 = sbr.rel (%p553) target = $region28
        $region27: #{transformer_forward.1} parent=19 // pred_region
          %s556 = sand.u32 %s30, 1
          %s557 = scalar_lea.sflag [#allocation3], %s556
          %s558 = sand.u32 %s99, 1
          %s559 = scalar_lea.vmem [#allocation7], %s558
          %s561 = ssub.s32 16, 16
          %562 = vsyncadd %s557, %s561
          %s563 = smul.addr %s37, 16
          %s564 = scalar_lea.hbm %s2, %s563
          %s566 = sshll.u32 %s559, 4
          %s567 = int_to_ptr.vmem [resolvable:$true] %s566
          %569 = dma.hbm_to_vmem [thread:$0]  %s564, 16, %s567, %s557
        $region28: #{transformer_forward.1} parent=19 // pred_fallthru
          _
        // Predicated region
        $region29: #{transformer_forward.1} parent=19 // pred_check
          %p570 = pneg %p135
        $region30: #{transformer_forward.1} parent=19 // pred_check_branch
          %572 = sbr.rel (%p570) target = $region32
        $region31: #{transformer_forward.1} parent=19 // pred_region
          %s573 = sand.u32 %s30, 1
          %s574 = scalar_lea.sflag [#allocation3], %s573
          %s575 = sand.u32 %s125, 1
          %s576 = scalar_lea.vmem [#allocation8], %s575
          %s578 = ssub.s32 16, 16
          %579 = vsyncadd %s574, %s578
          %s580 = smul.addr %s38, 16
          %s581 = scalar_lea.hbm %s3, %s580
          %s583 = sshll.u32 %s576, 4
          %s584 = int_to_ptr.vmem [resolvable:$true] %s583
          %586 = dma.hbm_to_vmem [thread:$0]  %s581, 16, %s584, %s574
        $region32: #{transformer_forward.1} parent=19 // pred_fallthru
          _
        // Predicated region
        $region33: #{transformer_forward.1} parent=19 // pred_check
          %p587 = pneg %p161
        $region34: #{transformer_forward.1} parent=19 // pred_check_branch
          %589 = sbr.rel (%p587) target = $region36
        $region35: #{transformer_forward.1} parent=19 // pred_region
          %s590 = sand.u32 %s30, 1
          %s591 = scalar_lea.sflag [#allocation3], %s590
          %s592 = sand.u32 %s151, 1
          %s593 = scalar_lea.vmem [#allocation9], %s592
          %s595 = ssub.s32 16, 16
          %596 = vsyncadd %s591, %s595
          %s597 = smul.addr %s38, 16
          %s598 = scalar_lea.hbm %s4, %s597
          %s600 = sshll.u32 %s593, 4
          %s601 = int_to_ptr.vmem [resolvable:$true] %s600
          %603 = dma.hbm_to_vmem [thread:$0]  %s598, 16, %s601, %s591
        $region36: #{transformer_forward.1} parent=19 // pred_fallthru
          _
        // Predicated region
        $region37: #{transformer_forward.1} parent=19 // pred_check
          %p604 = pneg %p187
        $region38: #{transformer_forward.1} parent=19 // pred_check_branch
          %606 = sbr.rel (%p604) target = $region40
        $region39: #{transformer_forward.1} parent=19 // pred_region
          %s607 = sand.u32 %s30, 1
          %s608 = scalar_lea.sflag [#allocation3], %s607
          %s609 = sand.u32 %s177, 1
          %s610 = smul.addr %s609, 16
          %s611 = scalar_lea.vmem [#allocation10], %s610
          %s613 = ssub.s32 256, 256
          %614 = vsyncadd %s608, %s613
          %s615 = smul.addr %s38, 4
          %s616 = smul.addr %s615, 64
          %s617 = scalar_lea.hbm %s5, %s616
          %s618 = sshll.u32 %s611, 4
          %s619 = int_to_ptr.vmem [resolvable:$true] %s618
          %624 = dma.hbm_to_vmem [thread:$0]  %s617, 256, %s619, %s608, 64, 64, 4
        $region40: #{transformer_forward.1} parent=19 // pred_fallthru
          _
        // Predicated region
        $region41: #{transformer_forward.1} parent=19 // pred_check
          %p625 = pneg %p213
        $region42: #{transformer_forward.1} parent=19 // pred_check_branch
          %627 = sbr.rel (%p625) target = $region44
        $region43: #{transformer_forward.1} parent=19 // pred_region
          %s628 = sand.u32 %s30, 1
          %s629 = scalar_lea.sflag [#allocation3], %s628
          %s630 = sand.u32 %s203, 1
          %s631 = scalar_lea.vmem [#allocation11], %s630
          %s633 = ssub.s32 16, 16
          %634 = vsyncadd %s629, %s633
          %s635 = smul.addr %s38, 16
          %s636 = scalar_lea.hbm %s6, %s635
          %s638 = sshll.u32 %s631, 4
          %s639 = int_to_ptr.vmem [resolvable:$true] %s638
          %641 = dma.hbm_to_vmem [thread:$0]  %s636, 16, %s639, %s629
        $region44: #{transformer_forward.1} parent=19 // pred_fallthru
          _
        // Predicated region
        $region45: #{transformer_forward.1} parent=19 // pred_check
          %p642 = pneg %p239
        $region46: #{transformer_forward.1} parent=19 // pred_check_branch
          %644 = sbr.rel (%p642) target = $region48
        $region47: #{transformer_forward.1} parent=19 // pred_region
          %s645 = sand.u32 %s30, 1
          %s646 = scalar_lea.sflag [#allocation3], %s645
          %s647 = sand.u32 %s229, 1
          %s648 = smul.addr %s647, 16
          %s649 = scalar_lea.vmem [#allocation12], %s648
          %s651 = ssub.s32 256, 256
          %652 = vsyncadd %s646, %s651
          %s653 = smul.addr %s38, 4
          %s654 = smul.addr %s653, 64
          %s655 = scalar_lea.hbm %s7, %s654
          %s656 = sshll.u32 %s649, 4
          %s657 = int_to_ptr.vmem [resolvable:$true] %s656
          %662 = dma.hbm_to_vmem [thread:$0]  %s655, 256, %s657, %s646, 64, 64, 4
        $region48: #{transformer_forward.1} parent=19 // pred_fallthru
          _
        // Predicated region
        $region49: #{transformer_forward.1} parent=19 // pred_check
          %p663 = pneg %p265
        $region50: #{transformer_forward.1} parent=19 // pred_check_branch
          %665 = sbr.rel (%p663) target = $region52
        $region51: #{transformer_forward.1} parent=19 // pred_region
          %s666 = sand.u32 %s30, 1
          %s667 = scalar_lea.sflag [#allocation3], %s666
          %s668 = sand.u32 %s255, 1
          %s669 = scalar_lea.vmem [#allocation13], %s668
          %s671 = ssub.s32 16, 16
          %672 = vsyncadd %s667, %s671
          %s673 = smul.addr %s38, 16
          %s674 = scalar_lea.hbm %s8, %s673
          %s676 = sshll.u32 %s669, 4
          %s677 = int_to_ptr.vmem [resolvable:$true] %s676
          %679 = dma.hbm_to_vmem [thread:$0]  %s674, 16, %s677, %s667
        $region52: #{transformer_forward.1} parent=19 // pred_fallthru
          _
        // Predicated region
        $region53: #{transformer_forward.1} parent=19 // pred_check
          %p680 = pneg %p291
        $region54: #{transformer_forward.1} parent=19 // pred_check_branch
          %682 = sbr.rel (%p680) target = $region56
        $region55: #{transformer_forward.1} parent=19 // pred_region
          %s683 = sand.u32 %s30, 1
          %s684 = scalar_lea.sflag [#allocation3], %s683
          %s685 = sand.u32 %s281, 1
          %s686 = smul.addr %s685, 16
          %s687 = scalar_lea.vmem [#allocation14], %s686
          %s689 = ssub.s32 256, 256
          %690 = vsyncadd %s684, %s689
          %s691 = smul.addr %s38, 4
          %s692 = smul.addr %s691, 64
          %s693 = scalar_lea.hbm %s9, %s692
          %s694 = sshll.u32 %s687, 4
          %s695 = int_to_ptr.vmem [resolvable:$true] %s694
          %700 = dma.hbm_to_vmem [thread:$0]  %s693, 256, %s695, %s684, 64, 64, 4
        $region56: #{transformer_forward.1} parent=19 // pred_fallthru
          _
        // Predicated region
        $region57: #{transformer_forward.1} parent=19 // pred_check
          %p701 = pneg %p317
        $region58: #{transformer_forward.1} parent=19 // pred_check_branch
          %703 = sbr.rel (%p701) target = $region60
        $region59: #{transformer_forward.1} parent=19 // pred_region
          %s704 = sand.u32 %s30, 1
          %s705 = scalar_lea.sflag [#allocation3], %s704
          %s706 = sand.u32 %s307, 1
          %s707 = scalar_lea.vmem [#allocation15], %s706
          %s709 = ssub.s32 16, 16
          %710 = vsyncadd %s705, %s709
          %s711 = smul.addr %s38, 16
          %s712 = scalar_lea.hbm %s10, %s711
          %s714 = sshll.u32 %s707, 4
          %s715 = int_to_ptr.vmem [resolvable:$true] %s714
          %717 = dma.hbm_to_vmem [thread:$0]  %s712, 16, %s715, %s705
        $region60: #{transformer_forward.1} parent=19 // pred_fallthru
          _
        // Predicated region
        $region61: #{transformer_forward.1} parent=19 // pred_check
          %p718 = pneg %p343
        $region62: #{transformer_forward.1} parent=19 // pred_check_branch
          %720 = sbr.rel (%p718) target = $region64
        $region63: #{transformer_forward.1} parent=19 // pred_region
          %s721 = sand.u32 %s30, 1
          %s722 = scalar_lea.sflag [#allocation3], %s721
          %s723 = sand.u32 %s333, 1
          %s724 = scalar_lea.vmem [#allocation16], %s723
          %s726 = ssub.s32 16, 16
          %727 = vsyncadd %s722, %s726
          %s728 = smul.addr %s38, 16
          %s729 = scalar_lea.hbm %s11, %s728
          %s731 = sshll.u32 %s724, 4
          %s732 = int_to_ptr.vmem [resolvable:$true] %s731
          %734 = dma.hbm_to_vmem [thread:$0]  %s729, 16, %s732, %s722
        $region64: #{transformer_forward.1} parent=19 // pred_fallthru
          _
        // Predicated region
        $region65: #{transformer_forward.1} parent=19 // pred_check
          %p735 = pneg %p369
        $region66: #{transformer_forward.1} parent=19 // pred_check_branch
          %737 = sbr.rel (%p735) target = $region68
        $region67: #{transformer_forward.1} parent=19 // pred_region
          %s738 = sand.u32 %s30, 1
          %s739 = scalar_lea.sflag [#allocation3], %s738
          %s740 = sand.u32 %s359, 1
          %s741 = scalar_lea.vmem [#allocation17], %s740
          %s743 = ssub.s32 16, 16
          %744 = vsyncadd %s739, %s743
          %s745 = smul.addr %s38, 16
          %s746 = scalar_lea.hbm %s12, %s745
          %s748 = sshll.u32 %s741, 4
          %s749 = int_to_ptr.vmem [resolvable:$true] %s748
          %751 = dma.hbm_to_vmem [thread:$0]  %s746, 16, %s749, %s739
        $region68: #{transformer_forward.1} parent=19 // pred_fallthru
          _
        // Predicated region
        $region69: #{transformer_forward.1} parent=19 // pred_check
          %p752 = pneg %p395
        $region70: #{transformer_forward.1} parent=19 // pred_check_branch
          %754 = sbr.rel (%p752) target = $region72
        $region71: #{transformer_forward.1} parent=19 // pred_region
          %s755 = sand.u32 %s30, 1
          %s756 = scalar_lea.sflag [#allocation3], %s755
          %s757 = sand.u32 %s385, 1
          %s758 = smul.addr %s757, 16
          %s759 = scalar_lea.vmem [#allocation18], %s758
          %s761 = ssub.s32 256, 256
          %762 = vsyncadd %s756, %s761
          %s763 = smul.addr %s38, 4
          %s764 = smul.addr %s763, 64
          %s765 = scalar_lea.hbm %s13, %s764
          %s766 = sshll.u32 %s759, 4
          %s767 = int_to_ptr.vmem [resolvable:$true] %s766
          %772 = dma.hbm_to_vmem [thread:$0]  %s765, 256, %s767, %s756, 64, 64, 4
        $region72: #{transformer_forward.1} parent=19 // pred_fallthru
          _
        // Predicated region
        $region73: #{transformer_forward.1} parent=19 // pred_check
          %p773 = pneg %p421
        $region74: #{transformer_forward.1} parent=19 // pred_check_branch
          %775 = sbr.rel (%p773) target = $region76
        $region75: #{transformer_forward.1} parent=19 // pred_region
          %s776 = sand.u32 %s30, 1
          %s777 = scalar_lea.sflag [#allocation3], %s776
          %s778 = sand.u32 %s411, 1
          %s779 = scalar_lea.vmem [#allocation19], %s778
          %s781 = ssub.s32 16, 16
          %782 = vsyncadd %s777, %s781
          %s783 = smul.addr %s38, 16
          %s784 = scalar_lea.hbm %s14, %s783
          %s786 = sshll.u32 %s779, 4
          %s787 = int_to_ptr.vmem [resolvable:$true] %s786
          %789 = dma.hbm_to_vmem [thread:$0]  %s784, 16, %s787, %s777
        $region76: #{transformer_forward.1} parent=19 // pred_fallthru
          _
        // Predicated region
        $region77: #{transformer_forward.1} parent=19 // pred_check
          %p790 = pneg %p447
        $region78: #{transformer_forward.1} parent=19 // pred_check_branch
          %792 = sbr.rel (%p790) target = $region80
        $region79: #{transformer_forward.1} parent=19 // pred_region
          %s793 = sand.u32 %s30, 1
          %s794 = scalar_lea.sflag [#allocation3], %s793
          %s795 = sand.u32 %s437, 1
          %s796 = smul.addr %s795, 64
          %s797 = scalar_lea.vmem [#allocation20], %s796
          %s799 = ssub.s32 1024, 1024
          %800 = vsyncadd %s794, %s799
          %s801 = smul.addr %s38, 16
          %s802 = smul.addr %s801, 64
          %s803 = scalar_lea.hbm %s15, %s802
          %s804 = sshll.u32 %s797, 4
          %s805 = int_to_ptr.vmem [resolvable:$true] %s804
          %810 = dma.hbm_to_vmem [thread:$0]  %s803, 1024, %s805, %s794, 64, 64, 4
        $region80: #{transformer_forward.1} parent=19 // pred_fallthru
          _
        // Predicated region
        $region81: #{transformer_forward.1} parent=19 // pred_check
          %p811 = pneg %p473
        $region82: #{transformer_forward.1} parent=19 // pred_check_branch
          %813 = sbr.rel (%p811) target = $region84
        $region83: #{transformer_forward.1} parent=19 // pred_region
          %s814 = sand.u32 %s30, 1
          %s815 = scalar_lea.sflag [#allocation3], %s814
          %s816 = sand.u32 %s463, 1
          %s817 = scalar_lea.vmem [#allocation21], %s816
          %s819 = ssub.s32 16, 16
          %820 = vsyncadd %s815, %s819
          %s821 = smul.addr %s38, 16
          %s822 = scalar_lea.hbm %s16, %s821
          %s824 = sshll.u32 %s817, 4
          %s825 = int_to_ptr.vmem [resolvable:$true] %s824
          %827 = dma.hbm_to_vmem [thread:$0]  %s822, 16, %s825, %s815
        $region84: #{transformer_forward.1} parent=19 // pred_fallthru
          _
      $region20: #{transformer_forward.1} parent=5 // pred_fallthru
        _
      %p828 = scmp.le.s32.totalorder 1, %s30
      %p829 = scmp.lt.s32.totalorder %s30, 5
      %p830 = pnand %p828, %p829
      %p831 = pneg %p830
      // Predicated region
      $region85: #{transformer_forward.1} parent=5 // pred_check
        _
      $region86: #{transformer_forward.1} parent=5 // pred_check_branch
        %833 = sbr.rel (%p830) target = $region88
      $region87: #{transformer_forward.1} parent=5 // pred_region
        %s834 = ssub.s32 %s30, 1
        %s835 = sand.u32 %s35, 1
        %s836 = scalar_lea.sflag [#allocation3], %s835
        %s837 = sand.u32 %s55, 1
        %s838 = smul.addr %s837, 8
        %s839 = scalar_lea.vmem [#allocation2], %s838
        // Predicated region
        $region89: #{transformer_forward.1} parent=87 // pred_check
          %p840 = pneg %p68
        $region90: #{transformer_forward.1} parent=87 // pred_check_branch
          %842 = sbr.rel (%p840) target = $region92
        $region91: #{transformer_forward.1} parent=87 // pred_region
          %843 = dma.done %s836, 128
        $region92: #{transformer_forward.1} parent=87 // pred_fallthru
          _
        // Predicated region
        $region93: #{transformer_forward.1} parent=87 // pred_check
          %p844 = pneg %p89
        $region94: #{transformer_forward.1} parent=87 // pred_check_branch
          %846 = sbr.rel (%p844) target = $region96
        $region95: #{transformer_forward.1} parent=87 // pred_region
          %847 = dma.done [#allocation6], 128
        $region96: #{transformer_forward.1} parent=87 // pred_fallthru
          _
        %s848 = sand.u32 %s35, 1
        %s849 = scalar_lea.sflag [#allocation3], %s848
        %s850 = sand.u32 %s102, 1
        %s851 = scalar_lea.vmem [#allocation7], %s850
        // Predicated region
        $region97: #{transformer_forward.1} parent=87 // pred_check
          %p852 = pneg %p115
        $region98: #{transformer_forward.1} parent=87 // pred_check_branch
          %854 = sbr.rel (%p852) target = $region100
        $region99: #{transformer_forward.1} parent=87 // pred_region
          %855 = dma.done %s849, 16
        $region100: #{transformer_forward.1} parent=87 // pred_fallthru
          _
        %s856 = sand.u32 %s35, 1
        %s857 = scalar_lea.sflag [#allocation3], %s856
        %s858 = sand.u32 %s128, 1
        %s859 = scalar_lea.vmem [#allocation8], %s858
        // Predicated region
        $region101: #{transformer_forward.1} parent=87 // pred_check
          %p860 = pneg %p141
        $region102: #{transformer_forward.1} parent=87 // pred_check_branch
          %862 = sbr.rel (%p860) target = $region104
        $region103: #{transformer_forward.1} parent=87 // pred_region
          %863 = dma.done %s857, 16
        $region104: #{transformer_forward.1} parent=87 // pred_fallthru
          _
        %s864 = sand.u32 %s35, 1
        %s865 = scalar_lea.sflag [#allocation3], %s864
        %s866 = sand.u32 %s154, 1
        %s867 = scalar_lea.vmem [#allocation9], %s866
        // Predicated region
        $region105: #{transformer_forward.1} parent=87 // pred_check
          %p868 = pneg %p167
        $region106: #{transformer_forward.1} parent=87 // pred_check_branch
          %870 = sbr.rel (%p868) target = $region108
        $region107: #{transformer_forward.1} parent=87 // pred_region
          %871 = dma.done %s865, 16
        $region108: #{transformer_forward.1} parent=87 // pred_fallthru
          _
        %s872 = sand.u32 %s35, 1
        %s873 = scalar_lea.sflag [#allocation3], %s872
        %s874 = sand.u32 %s180, 1
        %s875 = smul.addr %s874, 16
        %s876 = scalar_lea.vmem [#allocation10], %s875
        // Predicated region
        $region109: #{transformer_forward.1} parent=87 // pred_check
          %p877 = pneg %p193
        $region110: #{transformer_forward.1} parent=87 // pred_check_branch
          %879 = sbr.rel (%p877) target = $region112
        $region111: #{transformer_forward.1} parent=87 // pred_region
          %880 = dma.done %s873, 256
        $region112: #{transformer_forward.1} parent=87 // pred_fallthru
          _
        %s881 = sand.u32 %s35, 1
        %s882 = scalar_lea.sflag [#allocation3], %s881
        %s883 = sand.u32 %s206, 1
        %s884 = scalar_lea.vmem [#allocation11], %s883
        // Predicated region
        $region113: #{transformer_forward.1} parent=87 // pred_check
          %p885 = pneg %p219
        $region114: #{transformer_forward.1} parent=87 // pred_check_branch
          %887 = sbr.rel (%p885) target = $region116
        $region115: #{transformer_forward.1} parent=87 // pred_region
          %888 = dma.done %s882, 16
        $region116: #{transformer_forward.1} parent=87 // pred_fallthru
          _
        %s889 = sand.u32 %s35, 1
        %s890 = scalar_lea.sflag [#allocation3], %s889
        %s891 = sand.u32 %s232, 1
        %s892 = smul.addr %s891, 16
        %s893 = scalar_lea.vmem [#allocation12], %s892
        // Predicated region
        $region117: #{transformer_forward.1} parent=87 // pred_check
          %p894 = pneg %p245
        $region118: #{transformer_forward.1} parent=87 // pred_check_branch
          %896 = sbr.rel (%p894) target = $region120
        $region119: #{transformer_forward.1} parent=87 // pred_region
          %897 = dma.done %s890, 256
        $region120: #{transformer_forward.1} parent=87 // pred_fallthru
          _
        %s898 = sand.u32 %s35, 1
        %s899 = scalar_lea.sflag [#allocation3], %s898
        %s900 = sand.u32 %s258, 1
        %s901 = scalar_lea.vmem [#allocation13], %s900
        // Predicated region
        $region121: #{transformer_forward.1} parent=87 // pred_check
          %p902 = pneg %p271
        $region122: #{transformer_forward.1} parent=87 // pred_check_branch
          %904 = sbr.rel (%p902) target = $region124
        $region123: #{transformer_forward.1} parent=87 // pred_region
          %905 = dma.done %s899, 16
        $region124: #{transformer_forward.1} parent=87 // pred_fallthru
          _
        %s906 = sand.u32 %s35, 1
        %s907 = scalar_lea.sflag [#allocation3], %s906
        %s908 = sand.u32 %s284, 1
        %s909 = smul.addr %s908, 16
        %s910 = scalar_lea.vmem [#allocation14], %s909
        // Predicated region
        $region125: #{transformer_forward.1} parent=87 // pred_check
          %p911 = pneg %p297
        $region126: #{transformer_forward.1} parent=87 // pred_check_branch
          %913 = sbr.rel (%p911) target = $region128
        $region127: #{transformer_forward.1} parent=87 // pred_region
          %914 = dma.done %s907, 256
        $region128: #{transformer_forward.1} parent=87 // pred_fallthru
          _
        %s915 = sand.u32 %s35, 1
        %s916 = scalar_lea.sflag [#allocation3], %s915
        %s917 = sand.u32 %s310, 1
        %s918 = scalar_lea.vmem [#allocation15], %s917
        // Predicated region
        $region129: #{transformer_forward.1} parent=87 // pred_check
          %p919 = pneg %p323
        $region130: #{transformer_forward.1} parent=87 // pred_check_branch
          %921 = sbr.rel (%p919) target = $region132
        $region131: #{transformer_forward.1} parent=87 // pred_region
          %922 = dma.done %s916, 16
        $region132: #{transformer_forward.1} parent=87 // pred_fallthru
          _
        %s923 = sand.u32 %s35, 1
        %s924 = scalar_lea.sflag [#allocation3], %s923
        %s925 = sand.u32 %s336, 1
        %s926 = scalar_lea.vmem [#allocation16], %s925
        // Predicated region
        $region133: #{transformer_forward.1} parent=87 // pred_check
          %p927 = pneg %p349
        $region134: #{transformer_forward.1} parent=87 // pred_check_branch
          %929 = sbr.rel (%p927) target = $region136
        $region135: #{transformer_forward.1} parent=87 // pred_region
          %930 = dma.done %s924, 16
        $region136: #{transformer_forward.1} parent=87 // pred_fallthru
          _
        %s931 = sand.u32 %s35, 1
        %s932 = scalar_lea.sflag [#allocation3], %s931
        %s933 = sand.u32 %s362, 1
        %s934 = scalar_lea.vmem [#allocation17], %s933
        // Predicated region
        $region137: #{transformer_forward.1} parent=87 // pred_check
          %p935 = pneg %p375
        $region138: #{transformer_forward.1} parent=87 // pred_check_branch
          %937 = sbr.rel (%p935) target = $region140
        $region139: #{transformer_forward.1} parent=87 // pred_region
          %938 = dma.done %s932, 16
        $region140: #{transformer_forward.1} parent=87 // pred_fallthru
          _
        %s939 = sand.u32 %s35, 1
        %s940 = scalar_lea.sflag [#allocation3], %s939
        %s941 = sand.u32 %s388, 1
        %s942 = smul.addr %s941, 16
        %s943 = scalar_lea.vmem [#allocation18], %s942
        // Predicated region
        $region141: #{transformer_forward.1} parent=87 // pred_check
          %p944 = pneg %p401
        $region142: #{transformer_forward.1} parent=87 // pred_check_branch
          %946 = sbr.rel (%p944) target = $region144
        $region143: #{transformer_forward.1} parent=87 // pred_region
          %947 = dma.done %s940, 256
        $region144: #{transformer_forward.1} parent=87 // pred_fallthru
          _
        %s948 = sand.u32 %s35, 1
        %s949 = scalar_lea.sflag [#allocation3], %s948
        %s950 = sand.u32 %s414, 1
        %s951 = scalar_lea.vmem [#allocation19], %s950
        // Predicated region
        $region145: #{transformer_forward.1} parent=87 // pred_check
          %p952 = pneg %p427
        $region146: #{transformer_forward.1} parent=87 // pred_check_branch
          %954 = sbr.rel (%p952) target = $region148
        $region147: #{transformer_forward.1} parent=87 // pred_region
          %955 = dma.done %s949, 16
        $region148: #{transformer_forward.1} parent=87 // pred_fallthru
          _
        %s956 = sand.u32 %s35, 1
        %s957 = scalar_lea.sflag [#allocation3], %s956
        %s958 = sand.u32 %s440, 1
        %s959 = smul.addr %s958, 64
        %s960 = scalar_lea.vmem [#allocation20], %s959
        // Predicated region
        $region149: #{transformer_forward.1} parent=87 // pred_check
          %p961 = pneg %p453
        $region150: #{transformer_forward.1} parent=87 // pred_check_branch
          %963 = sbr.rel (%p961) target = $region152
        $region151: #{transformer_forward.1} parent=87 // pred_region
          %964 = dma.done %s957, 1024
        $region152: #{transformer_forward.1} parent=87 // pred_fallthru
          _
        %s965 = sand.u32 %s35, 1
        %s966 = scalar_lea.sflag [#allocation3], %s965
        %s967 = sand.u32 %s466, 1
        %s968 = scalar_lea.vmem [#allocation21], %s967
        // Predicated region
        $region153: #{transformer_forward.1} parent=87 // pred_check
          %p969 = pneg %p479
        $region154: #{transformer_forward.1} parent=87 // pred_check_branch
          %971 = sbr.rel (%p969) target = $region156
        $region155: #{transformer_forward.1} parent=87 // pred_region
          %972 = dma.done %s966, 16
        $region156: #{transformer_forward.1} parent=87 // pred_fallthru
          _
        %s973 = sand.u32 %s35, 1
        %s974 = scalar_lea.sflag [#allocation3], %s973
        %s975 = sand.u32 %s55, 1
        %s976 = smul.addr %s975, 8
        %s977 = scalar_lea.vmem [#allocation2], %s976
        %p978 = pneg %p68
        %p979 = pneg %p65
        %p980 = pneg %p89
        %p981 = pneg %p86
        %s982 = sand.u32 %s35, 1
        %s983 = scalar_lea.sflag [#allocation3], %s982
        %s984 = sand.u32 %s102, 1
        %s985 = scalar_lea.vmem [#allocation7], %s984
        %p986 = pneg %p115
        %p987 = pneg %p112
        %s988 = sand.u32 %s35, 1
        %s989 = scalar_lea.sflag [#allocation3], %s988
        %s990 = sand.u32 %s128, 1
        %s991 = scalar_lea.vmem [#allocation8], %s990
        %p992 = pneg %p141
        %p993 = pneg %p138
        %s994 = sand.u32 %s35, 1
        %s995 = scalar_lea.sflag [#allocation3], %s994
        %s996 = sand.u32 %s154, 1
        %s997 = scalar_lea.vmem [#allocation9], %s996
        %p998 = pneg %p167
        %p999 = pneg %p164
        %s1000 = sand.u32 %s35, 1
        %s1001 = scalar_lea.sflag [#allocation3], %s1000
        %s1002 = sand.u32 %s180, 1
        %s1003 = smul.addr %s1002, 16
        %s1004 = scalar_lea.vmem [#allocation10], %s1003
        %p1005 = pneg %p193
        %p1006 = pneg %p190
        %s1007 = sand.u32 %s35, 1
        %s1008 = scalar_lea.sflag [#allocation3], %s1007
        %s1009 = sand.u32 %s206, 1
        %s1010 = scalar_lea.vmem [#allocation11], %s1009
        %p1011 = pneg %p219
        %p1012 = pneg %p216
        %s1013 = sand.u32 %s35, 1
        %s1014 = scalar_lea.sflag [#allocation3], %s1013
        %s1015 = sand.u32 %s232, 1
        %s1016 = smul.addr %s1015, 16
        %s1017 = scalar_lea.vmem [#allocation12], %s1016
        %p1018 = pneg %p245
        %p1019 = pneg %p242
        %s1020 = sand.u32 %s35, 1
        %s1021 = scalar_lea.sflag [#allocation3], %s1020
        %s1022 = sand.u32 %s258, 1
        %s1023 = scalar_lea.vmem [#allocation13], %s1022
        %p1024 = pneg %p271
        %p1025 = pneg %p268
        %s1026 = sand.u32 %s35, 1
        %s1027 = scalar_lea.sflag [#allocation3], %s1026
        %s1028 = sand.u32 %s284, 1
        %s1029 = smul.addr %s1028, 16
        %s1030 = scalar_lea.vmem [#allocation14], %s1029
        %p1031 = pneg %p297
        %p1032 = pneg %p294
        %s1033 = sand.u32 %s35, 1
        %s1034 = scalar_lea.sflag [#allocation3], %s1033
        %s1035 = sand.u32 %s310, 1
        %s1036 = scalar_lea.vmem [#allocation15], %s1035
        %p1037 = pneg %p323
        %p1038 = pneg %p320
        %s1039 = sand.u32 %s35, 1
        %s1040 = scalar_lea.sflag [#allocation3], %s1039
        %s1041 = sand.u32 %s336, 1
        %s1042 = scalar_lea.vmem [#allocation16], %s1041
        %p1043 = pneg %p349
        %p1044 = pneg %p346
        %s1045 = sand.u32 %s35, 1
        %s1046 = scalar_lea.sflag [#allocation3], %s1045
        %s1047 = sand.u32 %s362, 1
        %s1048 = scalar_lea.vmem [#allocation17], %s1047
        %p1049 = pneg %p375
        %p1050 = pneg %p372
        %s1051 = sand.u32 %s35, 1
        %s1052 = scalar_lea.sflag [#allocation3], %s1051
        %s1053 = sand.u32 %s388, 1
        %s1054 = smul.addr %s1053, 16
        %s1055 = scalar_lea.vmem [#allocation18], %s1054
        %p1056 = pneg %p401
        %p1057 = pneg %p398
        %s1058 = sand.u32 %s35, 1
        %s1059 = scalar_lea.sflag [#allocation3], %s1058
        %s1060 = sand.u32 %s414, 1
        %s1061 = scalar_lea.vmem [#allocation19], %s1060
        %p1062 = pneg %p427
        %p1063 = pneg %p424
        %s1064 = sand.u32 %s35, 1
        %s1065 = scalar_lea.sflag [#allocation3], %s1064
        %s1066 = sand.u32 %s440, 1
        %s1067 = smul.addr %s1066, 64
        %s1068 = scalar_lea.vmem [#allocation20], %s1067
        %p1069 = pneg %p453
        %p1070 = pneg %p450
        %s1071 = sand.u32 %s35, 1
        %s1072 = scalar_lea.sflag [#allocation3], %s1071
        %s1073 = sand.u32 %s466, 1
        %s1074 = scalar_lea.vmem [#allocation21], %s1073
        %p1075 = pneg %p479
        %p1076 = pneg %p476
        %p1077 = pneg %p505
        %p1078 = pneg %p502
        %s1079 = sand.u32 %s492, 1
        %s1080 = scalar_lea.sflag [#allocation4], %s1079
        %s1081 = sand.u32 %s492, 1
        %s1082 = smul.addr %s1081, 8
        %s1083 = scalar_lea.vmem [#allocation22], %s1082
        %p1085 = scmp.eq.s32.totalorder %s40, 0
        // Predicated region
        $region157: #{transformer_forward.1} parent=87 // pred_check
          %p1086 = pneg %p1085
        $region158: #{transformer_forward.1} parent=87 // pred_check_branch
          %1088 = sbr.rel (%p1086) target = $region160
        $region159: #{transformer_forward.1} parent=87 // pred_region
          %v1089 = vld [vmem:[%s839] sm:$0xff]
          %v1090 = vld [vmem:[#allocation5] sm:$0xff]
          %v1091 = vadd.f32 %v1089, %v1090
          %v1092 = vld [vmem:[%s851] sm:$0x1]
          %v1094 = vlaneseq
          %v1095 = vshrl.u32 %v1094, 7
          %v1096 = vsub.s32 0, %v1095
          %v1097 = vrot.slane %v1092, %v1096
          %v1099 = vadd.f32 %v1091, %v1097
          %vm1100 = vcmask 261120
          %1101 = vst.msk [vmem:[%s1083] sm:$0xff] %vm1100, %v1099
        $region160: #{transformer_forward.1} parent=87 // pred_fallthru
          _
        %v1102 = vld [vmem:[%s1083] sm:$0xff]
        %v1103 = vld [vmem:[%s859] sm:$0x1]
        %v1104 = vld [vmem:[%s867] sm:$0x1]
        %vm1105 = vcmask 261120
        %v1106 = vsel %vm1105, %v1102, 0.0
        %1107 = vadd.xlane.f32.xlu0 %v1106
        %v1108 = vpop.xlane.xlu0 %1107
        %v1109 = vrcp.pop 32.0
        %v1110 = vmul.f32 %v1108, %v1109
        %v1111 = vsub.f32 %v1102, %v1110
        %v1112 = vmul.f32 %v1111, %v1111
        %v1113 = vsel %vm1105, %v1112, 0.0
        %1114 = vadd.xlane.f32.xlu0 %v1113
        %v1115 = vpop.xlane.xlu0 %1114
        %v1116 = vmul.f32 %v1115, %v1109
        %v1117 = vadd.f32 %v1116, 1e-05
        %v1118 = vrsqrt.pop %v1117
        %v1119 = vmul.f32 %v1111, %v1118
        %v1121 = vlaneseq
        %v1122 = vshrl.u32 %v1121, 7
        %v1123 = vsub.s32 0, %v1122
        %v1124 = vrot.slane %v1103, %v1123
        %v1126 = vmul.f32 %v1119, %v1124
        %v1128 = vlaneseq
        %v1129 = vshrl.u32 %v1128, 7
        %v1130 = vsub.s32 0, %v1129
        %v1131 = vrot.slane %v1104, %v1130
        %v1133 = vadd.f32 %v1126, %v1131
        %v1134 = vpack.c.bf16 %v1133, %v1133
        %v1135 = vld [vmem:[%s876] sm:$0xf]
        %v1136 = vld [vmem:[%s876 + $0x4] sm:$0xf]
        %v1137 = vld [vmem:[%s876 + $0x8] sm:$0xf]
        %v1138 = vld [vmem:[%s876 + $0xc] sm:$0xf]
        %v1139 = vld [vmem:[%s884] sm:$0x1]
        %v1141 = vlaneseq
        %v1142 = vshrl.u32 %v1141, 7
        %v1143 = vsub.s32 0, %v1142
        %v1144 = vrot.slane %v1139, %v1143
        %v1150 = vunpack.c.l.b16 %v1135
        %v1151 = vunpack.c.l.b16 %v1136
        %v1152 = vunpack.c.l.b16 %v1137
        %v1153 = vunpack.c.l.b16 %v1138
        %v1154 = vpack.c.b16 %v1151, %v1150
        %v1155 = vpack.c.b16 %v1153, %v1152
        %v1159 = vsel %vm1105, %v1134, 0
        %1161 = vmatprep.subr.bf16.mxu0 0
        %1162 = vmatpush1.bf16.msra.mxu0 %v1154
        %1163 = vmatprep.subr.bf16.mxu0 0
        %1164 = vmatpush1.bf16.msra.mxu0 %v1155
        %1165 = vmatprep.subr.bf16.mxu0 0
        %1166 = vmatpush1.bf16.msra.mxu0 0
        %1167 = vmatprep.subr.bf16.mxu0 0
        %1168 = vmatpush1.bf16.msra.mxu0 0
        %1169 = vmatprep.subr.bf16.mxu0 0
        %1170 = vmatpush1.bf16.msra.mxu0 0
        %1171 = vmatprep.subr.bf16.mxu0 0
        %1172 = vmatpush1.bf16.msra.mxu0 0
        %1173 = vmatprep.subr.bf16.mxu0 0
        %1174 = vmatpush1.bf16.msra.mxu0 0
        %1175 = vmatprep.subr.bf16.mxu0 0
        %1176 = vmatpush1.bf16.msra.mxu0 0
        %1177 = vmatprep.subr.bf16.mxu0 0
        %1178 = vmatpush1.bf16.msra.mxu0 0
        %1179 = vmatprep.subr.bf16.mxu0 0
        %1180 = vmatpush1.bf16.msra.mxu0 0
        %1181 = vmatprep.subr.bf16.mxu0 0
        %1182 = vmatpush1.bf16.msra.mxu0 0
        %1183 = vmatprep.subr.bf16.mxu0 0
        %1184 = vmatpush1.bf16.msra.mxu0 0
        %1185 = vmatprep.subr.bf16.mxu0 0
        %1186 = vmatpush1.bf16.msra.mxu0 0
        %1187 = vmatprep.subr.bf16.mxu0 0
        %1188 = vmatpush1.bf16.msra.mxu0 0
        %1189 = vmatprep.subr.bf16.mxu0 0
        %1190 = vmatpush1.bf16.msra.mxu0 0
        %1191 = vmatprep.subr.bf16.mxu0 0
        %1192 = vmatpush1.bf16.msra.mxu0 0
        %1193 = vmatprep.mubr.bf16.mxu0 0
        %1194 = vmatmul.mubr.bf16.gmra.mrb[0].mxu0 %v1159
        %v1195 = vpop.f32.mrb[0].mxu0
        %v1196 = vadd.f32 %v1144, %v1195
        %v1197 = vpop.f32.mrb[0].mxu0
        %v1198 = vpop.f32.mrb[0].mxu0
        %v1199 = vpop.f32.mrb[0].mxu0
        %1200 = vdwg.mxu0
        %v1201 = vld [vmem:[%s893] sm:$0xf]
        %v1202 = vld [vmem:[%s893 + $0x4] sm:$0xf]
        %v1203 = vld [vmem:[%s893 + $0x8] sm:$0xf]
        %v1204 = vld [vmem:[%s893 + $0xc] sm:$0xf]
        %v1205 = vld [vmem:[%s901] sm:$0x1]
        %v1207 = vlaneseq
        %v1208 = vshrl.u32 %v1207, 7
        %v1209 = vsub.s32 0, %v1208
        %v1210 = vrot.slane %v1205, %v1209
        %v1216 = vunpack.c.l.b16 %v1201
        %v1217 = vunpack.c.l.b16 %v1202
        %v1218 = vunpack.c.l.b16 %v1203
        %v1219 = vunpack.c.l.b16 %v1204
        %v1220 = vpack.c.b16 %v1217, %v1216
        %v1221 = vpack.c.b16 %v1219, %v1218
        %1224 = vmatprep.subr.bf16.mxu0 0
        %1225 = vmatpush1.bf16.msra.mxu0 %v1220
        %1226 = vmatprep.subr.bf16.mxu0 0
        %1227 = vmatpush1.bf16.msra.mxu0 %v1221
        %1228 = vmatprep.subr.bf16.mxu0 0
        %1229 = vmatpush1.bf16.msra.mxu0 0
        %1230 = vmatprep.subr.bf16.mxu0 0
        %1231 = vmatpush1.bf16.msra.mxu0 0
        %1232 = vmatprep.subr.bf16.mxu0 0
        %1233 = vmatpush1.bf16.msra.mxu0 0
        %1234 = vmatprep.subr.bf16.mxu0 0
        %1235 = vmatpush1.bf16.msra.mxu0 0
        %1236 = vmatprep.subr.bf16.mxu0 0
        %1237 = vmatpush1.bf16.msra.mxu0 0
        %1238 = vmatprep.subr.bf16.mxu0 0
        %1239 = vmatpush1.bf16.msra.mxu0 0
        %1240 = vmatprep.subr.bf16.mxu0 0
        %1241 = vmatpush1.bf16.msra.mxu0 0
        %1242 = vmatprep.subr.bf16.mxu0 0
        %1243 = vmatpush1.bf16.msra.mxu0 0
        %1244 = vmatprep.subr.bf16.mxu0 0
        %1245 = vmatpush1.bf16.msra.mxu0 0
        %1246 = vmatprep.subr.bf16.mxu0 0
        %1247 = vmatpush1.bf16.msra.mxu0 0
        %1248 = vmatprep.subr.bf16.mxu0 0
        %1249 = vmatpush1.bf16.msra.mxu0 0
        %1250 = vmatprep.subr.bf16.mxu0 0
        %1251 = vmatpush1.bf16.msra.mxu0 0
        %1252 = vmatprep.subr.bf16.mxu0 0
        %1253 = vmatpush1.bf16.msra.mxu0 0
        %1254 = vmatprep.subr.bf16.mxu0 0
        %1255 = vmatpush1.bf16.msra.mxu0 0
        %1256 = vmatprep.mubr.bf16.mxu0 0
        %1257 = vmatmul.mubr.bf16.gmra.mrb[0].mxu0 %v1159
        %v1258 = vpop.f32.mrb[0].mxu0
        %v1259 = vadd.f32 %v1210, %v1258
        %v1260 = vpop.f32.mrb[0].mxu0
        %v1261 = vpop.f32.mrb[0].mxu0
        %v1262 = vpop.f32.mrb[0].mxu0
        %1263 = vdwg.mxu0
        %v1264 = vpack.c.bf16 %v1259, %v1259
        %1266 = vrot.lane.b32.xlu0 %v1196, 120
        %v1267 = vpop.permute.xlu0 %1266
        %1269 = vrot.lane.b32.xlu0 %v1196, 112
        %v1270 = vpop.permute.xlu0 %1269
        %1272 = vrot.lane.b32.xlu0 %v1196, 104
        %v1273 = vpop.permute.xlu0 %1272
        %v1275 = vpack.c.bf16 %v1267, %v1196
        %v1276 = vpack.c.bf16 %v1273, %v1270
        %vm1277 = vcmask 64512
        %v1279 = vsel %vm1277, %v1275, 0
        %v1282 = vsel %vm1277, %v1276, 0
        %v1285 = vsel %vm1277, %v1264, 0
        %1287 = vmatprep.subr.bf16.mxu0 0
        %1288 = vmatpush1.bf16.xpose.msra.mxu0 %v1285
        %1289 = vmatprep.subr.bf16.mxu0 0
        %1290 = vmatpush1.bf16.xpose.msra.mxu0 0
        %1291 = vmatprep.subr.bf16.mxu0 0
        %1292 = vmatpush1.bf16.xpose.msra.mxu0 0
        %1293 = vmatprep.subr.bf16.mxu0 0
        %1294 = vmatpush1.bf16.xpose.msra.mxu0 0
        %1295 = vmatprep.subr.bf16.mxu0 0
        %1296 = vmatpush1.bf16.xpose.msra.mxu0 0
        %1297 = vmatprep.subr.bf16.mxu0 0
        %1298 = vmatpush1.bf16.xpose.msra.mxu0 0
        %1299 = vmatprep.subr.bf16.mxu0 0
        %1300 = vmatpush1.bf16.xpose.msra.mxu0 0
        %1301 = vmatprep.subr.bf16.mxu0 0
        %1302 = vmatpush1.bf16.xpose.msra.mxu0 0
        %1303 = vmatprep.subr.bf16.mxu0 0
        %1304 = vmatpush1.bf16.xpose.msra.mxu0 0
        %1305 = vmatprep.subr.bf16.mxu0 0
        %1306 = vmatpush1.bf16.xpose.msra.mxu0 0
        %1307 = vmatprep.subr.bf16.mxu0 0
        %1308 = vmatpush1.bf16.xpose.msra.mxu0 0
        %1309 = vmatprep.subr.bf16.mxu0 0
        %1310 = vmatpush1.bf16.xpose.msra.mxu0 0
        %1311 = vmatprep.subr.bf16.mxu0 0
        %1312 = vmatpush1.bf16.xpose.msra.mxu0 0
        %1313 = vmatprep.subr.bf16.mxu0 0
        %1314 = vmatpush1.bf16.xpose.msra.mxu0 0
        %1315 = vmatprep.subr.bf16.mxu0 0
        %1316 = vmatpush1.bf16.xpose.msra.mxu0 0
        %1317 = vmatprep.subr.bf16.mxu0 0
        %1318 = vmatpush1.bf16.xpose.msra.mxu0 0
        %1319 = vmatprep.mubr.bf16.mxu0 0
        %1320 = vmatmul.mubr.bf16.gmra.mrb[0].mxu0 %v1279
        %v1321 = vpop.f32.mrb[0].mxu0
        %v1322 = vadd.f32 0.0, %v1321
        %v1323 = vpop.f32.mrb[0].mxu0
        %v1324 = vpop.f32.mrb[0].mxu0
        %v1325 = vadd.f32 0.0, %v1324
        %v1326 = vpop.f32.mrb[0].mxu0
        %1327 = vmatprep.mubr.bf16.mxu0 0
        %1328 = vmatmul.mubr.bf16.gmra.mrb[0].mxu0 %v1282
        %v1329 = vpop.f32.mrb[0].mxu0
        %v1330 = vadd.f32 0.0, %v1329
        %v1331 = vpop.f32.mrb[0].mxu0
        %v1332 = vpop.f32.mrb[0].mxu0
        %v1333 = vadd.f32 0.0, %v1332
        %v1334 = vpop.f32.mrb[0].mxu0
        %1335 = vdwg.mxu0
        %v1336 = vsel %vm1277, %v1322, -inf
        %1337 = vmax.xlane.f32.xlu0 %v1336
        %v1338 = vpop.xlane.xlu0 %1337
        %v1339 = vsel %vm1277, %v1325, -inf
        %1340 = vmax.xlane.f32.xlu0 %v1339
        %v1341 = vpop.xlane.xlu0 %1340
        %v1342 = vsel %vm1277, %v1330, -inf
        %1343 = vmax.xlane.f32.xlu0 %v1342
        %v1344 = vpop.xlane.xlu0 %1343
        %v1345 = vsel %vm1277, %v1333, -inf
        %1346 = vmax.xlane.f32.xlu0 %v1345
        %v1347 = vpop.xlane.xlu0 %1346
        %v1348 = vsub.f32 %v1322, %v1338
        %v1349 = vsub.f32 %v1325, %v1341
        %v1350 = vsub.f32 %v1330, %v1344
        %v1351 = vsub.f32 %v1333, %v1347
        %v1352 = vmul.f32 %v1348, 1.442695
        %v1353 = vpow.pop %v1352
        %v1354 = vmul.f32 %v1349, 1.442695
        %v1355 = vpow.pop %v1354
        %v1356 = vmul.f32 %v1350, 1.442695
        %v1357 = vpow.pop %v1356
        %v1358 = vmul.f32 %v1351, 1.442695
        %v1359 = vpow.pop %v1358
        %v1360 = vsel %vm1277, %v1353, 0.0
        %1361 = vadd.xlane.f32.xlu0 %v1360
        %v1362 = vpop.xlane.xlu0 %1361
        %v1363 = vsel %vm1277, %v1355, 0.0
        %1364 = vadd.xlane.f32.xlu0 %v1363
        %v1365 = vpop.xlane.xlu0 %1364
        %v1366 = vsel %vm1277, %v1357, 0.0
        %1367 = vadd.xlane.f32.xlu0 %v1366
        %v1368 = vpop.xlane.xlu0 %1367
        %v1369 = vsel %vm1277, %v1359, 0.0
        %1370 = vadd.xlane.f32.xlu0 %v1369
        %v1371 = vpop.xlane.xlu0 %1370
        %v1372 = vrcp.pop %v1362
        %v1373 = vrcp.pop %v1365
        %v1374 = vrcp.pop %v1368
        %v1375 = vrcp.pop %v1371
        %v1376 = vmul.f32 %v1353, %v1372
        %v1377 = vmul.f32 %v1355, %v1373
        %v1378 = vmul.f32 %v1357, %v1374
        %v1379 = vmul.f32 %v1359, %v1375
        %v1380 = vpack.c.bf16 %v1377, %v1376
        %v1381 = vpack.c.bf16 %v1379, %v1378
        %1383 = vrot.lane.b32.xlu0 %v1264, 120
        %v1384 = vpop.permute.xlu0 %1383
        %v1386 = vsel %vm1277, %v1380, 0
        %v1389 = vsel %vm1277, %v1381, 0
        %vm1391 = vcmask 1043456
        %v1393 = vsel %vm1391, %v1384, 0
        %1395 = vmatprep.subr.bf16.mxu0 0
        %1396 = vmatpush1.bf16.msra.mxu0 %v1393
        %1397 = vmatprep.subr.bf16.mxu0 0
        %1398 = vmatpush1.bf16.msra.mxu0 0
        %1399 = vmatprep.subr.bf16.mxu0 0
        %1400 = vmatpush1.bf16.msra.mxu0 0
        %1401 = vmatprep.subr.bf16.mxu0 0
        %1402 = vmatpush1.bf16.msra.mxu0 0
        %1403 = vmatprep.subr.bf16.mxu0 0
        %1404 = vmatpush1.bf16.msra.mxu0 0
        %1405 = vmatprep.subr.bf16.mxu0 0
        %1406 = vmatpush1.bf16.msra.mxu0 0
        %1407 = vmatprep.subr.bf16.mxu0 0
        %1408 = vmatpush1.bf16.msra.mxu0 0
        %1409 = vmatprep.subr.bf16.mxu0 0
        %1410 = vmatpush1.bf16.msra.mxu0 0
        %1411 = vmatprep.subr.bf16.mxu0 0
        %1412 = vmatpush1.bf16.msra.mxu0 0
        %1413 = vmatprep.subr.bf16.mxu0 0
        %1414 = vmatpush1.bf16.msra.mxu0 0
        %1415 = vmatprep.subr.bf16.mxu0 0
        %1416 = vmatpush1.bf16.msra.mxu0 0
        %1417 = vmatprep.subr.bf16.mxu0 0
        %1418 = vmatpush1.bf16.msra.mxu0 0
        %1419 = vmatprep.subr.bf16.mxu0 0
        %1420 = vmatpush1.bf16.msra.mxu0 0
        %1421 = vmatprep.subr.bf16.mxu0 0
        %1422 = vmatpush1.bf16.msra.mxu0 0
        %1423 = vmatprep.subr.bf16.mxu0 0
        %1424 = vmatpush1.bf16.msra.mxu0 0
        %1425 = vmatprep.subr.bf16.mxu0 0
        %1426 = vmatpush1.bf16.msra.mxu0 0
        %1427 = vmatprep.mubr.bf16.mxu0 0
        %1428 = vmatmul.mubr.bf16.gmra.mrb[0].mxu0 %v1386
        %v1429 = vpop.f32.mrb[0].mxu0
        %v1430 = vadd.f32 0.0, %v1429
        %v1431 = vpop.f32.mrb[0].mxu0
        %v1432 = vpop.f32.mrb[0].mxu0
        %v1433 = vadd.f32 0.0, %v1432
        %v1434 = vpop.f32.mrb[0].mxu0
        %1435 = vmatprep.mubr.bf16.mxu0 0
        %1436 = vmatmul.mubr.bf16.gmra.mrb[0].mxu0 %v1389
        %v1437 = vpop.f32.mrb[0].mxu0
        %v1438 = vadd.f32 0.0, %v1437
        %v1439 = vpop.f32.mrb[0].mxu0
        %v1440 = vpop.f32.mrb[0].mxu0
        %v1441 = vadd.f32 0.0, %v1440
        %v1442 = vpop.f32.mrb[0].mxu0
        %1443 = vdwg.mxu0
        %1445 = vrot.lane.b32.xlu0 %v1433, 8
        %v1446 = vpop.permute.xlu0 %1445
        %1449 = vrot.lane.b32.xlu0 %v1438, 16
        %v1450 = vpop.permute.xlu0 %1449
        %1453 = vrot.lane.b32.xlu0 %v1441, 24
        %v1454 = vpop.permute.xlu0 %1453
        %v1456 = vsel %vm1277, %v1430, %v1446
        %vm1457 = vcmask 130048
        %v1458 = vsel %vm1457, %v1456, %v1450
        %vm1459 = vcmask 195584
        %v1460 = vsel %vm1459, %v1458, %v1454
        %v1461 = vpack.c.bf16 %v1460, %v1460
        %v1462 = vld [vmem:[%s910] sm:$0xf]
        %v1463 = vld [vmem:[%s910 + $0x4] sm:$0xf]
        %v1464 = vld [vmem:[%s910 + $0x8] sm:$0xf]
        %v1465 = vld [vmem:[%s910 + $0xc] sm:$0xf]
        %v1466 = vld [vmem:[%s918] sm:$0x1]
        %v1468 = vlaneseq
        %v1469 = vshrl.u32 %v1468, 7
        %v1470 = vsub.s32 0, %v1469
        %v1471 = vrot.slane %v1466, %v1470
        %v1477 = vunpack.c.l.b16 %v1462
        %v1478 = vunpack.c.l.b16 %v1463
        %v1479 = vunpack.c.l.b16 %v1464
        %v1480 = vunpack.c.l.b16 %v1465
        %v1481 = vpack.c.b16 %v1478, %v1477
        %v1482 = vpack.c.b16 %v1480, %v1479
        %v1486 = vsel %vm1105, %v1461, 0
        %1488 = vmatprep.subr.bf16.mxu0 0
        %1489 = vmatpush1.bf16.msra.mxu0 %v1481
        %1490 = vmatprep.subr.bf16.mxu0 0
        %1491 = vmatpush1.bf16.msra.mxu0 %v1482
        %1492 = vmatprep.subr.bf16.mxu0 0
        %1493 = vmatpush1.bf16.msra.mxu0 0
        %1494 = vmatprep.subr.bf16.mxu0 0
        %1495 = vmatpush1.bf16.msra.mxu0 0
        %1496 = vmatprep.subr.bf16.mxu0 0
        %1497 = vmatpush1.bf16.msra.mxu0 0
        %1498 = vmatprep.subr.bf16.mxu0 0
        %1499 = vmatpush1.bf16.msra.mxu0 0
        %1500 = vmatprep.subr.bf16.mxu0 0
        %1501 = vmatpush1.bf16.msra.mxu0 0
        %1502 = vmatprep.subr.bf16.mxu0 0
        %1503 = vmatpush1.bf16.msra.mxu0 0
        %1504 = vmatprep.subr.bf16.mxu0 0
        %1505 = vmatpush1.bf16.msra.mxu0 0
        %1506 = vmatprep.subr.bf16.mxu0 0
        %1507 = vmatpush1.bf16.msra.mxu0 0
        %1508 = vmatprep.subr.bf16.mxu0 0
        %1509 = vmatpush1.bf16.msra.mxu0 0
        %1510 = vmatprep.subr.bf16.mxu0 0
        %1511 = vmatpush1.bf16.msra.mxu0 0
        %1512 = vmatprep.subr.bf16.mxu0 0
        %1513 = vmatpush1.bf16.msra.mxu0 0
        %1514 = vmatprep.subr.bf16.mxu0 0
        %1515 = vmatpush1.bf16.msra.mxu0 0
        %1516 = vmatprep.subr.bf16.mxu0 0
        %1517 = vmatpush1.bf16.msra.mxu0 0
        %1518 = vmatprep.subr.bf16.mxu0 0
        %1519 = vmatpush1.bf16.msra.mxu0 0
        %1520 = vmatprep.mubr.bf16.mxu0 0
        %1521 = vmatmul.mubr.bf16.gmra.mrb[0].mxu0 %v1486
        %v1522 = vpop.f32.mrb[0].mxu0
        %v1523 = vadd.f32 %v1471, %v1522
        %v1524 = vpop.f32.mrb[0].mxu0
        %v1525 = vpop.f32.mrb[0].mxu0
        %v1526 = vpop.f32.mrb[0].mxu0
        %1527 = vdwg.mxu0
        %v1528 = vadd.f32 %v1102, %v1523
        %v1529 = vld [vmem:[%s926] sm:$0x1]
        %v1530 = vld [vmem:[%s934] sm:$0x1]
        %v1531 = vsel %vm1105, %v1528, 0.0
        %1532 = vadd.xlane.f32.xlu0 %v1531
        %v1533 = vpop.xlane.xlu0 %1532
        %v1534 = vmul.f32 %v1533, %v1109
        %v1535 = vsub.f32 %v1528, %v1534
        %v1536 = vmul.f32 %v1535, %v1535
        %v1537 = vsel %vm1105, %v1536, 0.0
        %1538 = vadd.xlane.f32.xlu0 %v1537
        %v1539 = vpop.xlane.xlu0 %1538
        %v1540 = vmul.f32 %v1539, %v1109
        %v1541 = vadd.f32 %v1540, 1e-05
        %v1542 = vrsqrt.pop %v1541
        %v1543 = vmul.f32 %v1535, %v1542
        %v1545 = vlaneseq
        %v1546 = vshrl.u32 %v1545, 7
        %v1547 = vsub.s32 0, %v1546
        %v1548 = vrot.slane %v1529, %v1547
        %v1550 = vmul.f32 %v1543, %v1548
        %v1552 = vlaneseq
        %v1553 = vshrl.u32 %v1552, 7
        %v1554 = vsub.s32 0, %v1553
        %v1555 = vrot.slane %v1530, %v1554
        %v1557 = vadd.f32 %v1550, %v1555
        %v1558 = vpack.c.bf16 %v1557, %v1557
        %v1559 = vld [vmem:[%s943] sm:$0xf]
        %v1560 = vld [vmem:[%s943 + $0x4] sm:$0xf]
        %v1561 = vld [vmem:[%s943 + $0x8] sm:$0xf]
        %v1562 = vld [vmem:[%s943 + $0xc] sm:$0xf]
        %v1563 = vld [vmem:[%s951] sm:$0x1]
        %v1565 = vlaneseq
        %v1566 = vshrl.u32 %v1565, 7
        %v1567 = vsub.s32 0, %v1566
        %v1568 = vrot.slane %v1563, %v1567
        %v1574 = vunpack.c.l.b16 %v1559
        %v1575 = vunpack.c.l.b16 %v1560
        %v1576 = vunpack.c.l.b16 %v1561
        %v1577 = vunpack.c.l.b16 %v1562
        %v1578 = vpack.c.b16 %v1575, %v1574
        %v1579 = vpack.c.b16 %v1577, %v1576
        %v1583 = vsel %vm1105, %v1558, 0
        %1585 = vmatprep.subr.bf16.mxu0 0
        %1586 = vmatpush1.bf16.msra.mxu0 %v1578
        %1587 = vmatprep.subr.bf16.mxu0 0
        %1588 = vmatpush1.bf16.msra.mxu0 %v1579
        %1589 = vmatprep.subr.bf16.mxu0 0
        %1590 = vmatpush1.bf16.msra.mxu0 0
        %1591 = vmatprep.subr.bf16.mxu0 0
        %1592 = vmatpush1.bf16.msra.mxu0 0
        %1593 = vmatprep.subr.bf16.mxu0 0
        %1594 = vmatpush1.bf16.msra.mxu0 0
        %1595 = vmatprep.subr.bf16.mxu0 0
        %1596 = vmatpush1.bf16.msra.mxu0 0
        %1597 = vmatprep.subr.bf16.mxu0 0
        %1598 = vmatpush1.bf16.msra.mxu0 0
        %1599 = vmatprep.subr.bf16.mxu0 0
        %1600 = vmatpush1.bf16.msra.mxu0 0
        %1601 = vmatprep.subr.bf16.mxu0 0
        %1602 = vmatpush1.bf16.msra.mxu0 0
        %1603 = vmatprep.subr.bf16.mxu0 0
        %1604 = vmatpush1.bf16.msra.mxu0 0
        %1605 = vmatprep.subr.bf16.mxu0 0
        %1606 = vmatpush1.bf16.msra.mxu0 0
        %1607 = vmatprep.subr.bf16.mxu0 0
        %1608 = vmatpush1.bf16.msra.mxu0 0
        %1609 = vmatprep.subr.bf16.mxu0 0
        %1610 = vmatpush1.bf16.msra.mxu0 0
        %1611 = vmatprep.subr.bf16.mxu0 0
        %1612 = vmatpush1.bf16.msra.mxu0 0
        %1613 = vmatprep.subr.bf16.mxu0 0
        %1614 = vmatpush1.bf16.msra.mxu0 0
        %1615 = vmatprep.subr.bf16.mxu0 0
        %1616 = vmatpush1.bf16.msra.mxu0 0
        %1617 = vmatprep.mubr.bf16.mxu0 0
        %1618 = vmatmul.mubr.bf16.gmra.mrb[0].mxu0 %v1583
        %v1619 = vpop.f32.mrb[0].mxu0
        %v1620 = vadd.f32 %v1568, %v1619
        %v1621 = vpop.f32.mrb[0].mxu0
        %v1622 = vpop.f32.mrb[0].mxu0
        %v1623 = vpop.f32.mrb[0].mxu0
        %1624 = vdwg.mxu0
        %v1625 = vmul.f32 %v1620, %v1620
        %v1626 = vmul.f32 %v1620, %v1625
        %v1627 = vmul.f32 %v1626, 0.044715
        %v1628 = vadd.f32 %v1620, %v1627
        %v1629 = vmul.f32 %v1628, 0.7978846
        %v1630 = vtanh.pop %v1629
        %v1631 = vadd.f32 %v1630, 1.0
        %v1632 = vmul.f32 %v1631, 0.5
        %v1633 = vmul.f32 %v1620, %v1632
        %v1634 = vpack.c.bf16 %v1633, %v1633
        %v1635 = vld [vmem:[%s960] sm:$0xf]
        %v1636 = vld [vmem:[%s960 + $0x4] sm:$0xf]
        %v1637 = vld [vmem:[%s960 + $0x8] sm:$0xf]
        %v1638 = vld [vmem:[%s960 + $0xc] sm:$0xf]
        %v1639 = vld [vmem:[%s960 + $0x10] sm:$0xf]
        %v1640 = vld [vmem:[%s960 + $0x14] sm:$0xf]
        %v1641 = vld [vmem:[%s960 + $0x18] sm:$0xf]
        %v1642 = vld [vmem:[%s960 + $0x1c] sm:$0xf]
        %v1643 = vld [vmem:[%s960 + $0x20] sm:$0xf]
        %v1644 = vld [vmem:[%s960 + $0x24] sm:$0xf]
        %v1645 = vld [vmem:[%s960 + $0x28] sm:$0xf]
        %v1646 = vld [vmem:[%s960 + $0x2c] sm:$0xf]
        %v1647 = vld [vmem:[%s960 + $0x30] sm:$0xf]
        %v1648 = vld [vmem:[%s960 + $0x34] sm:$0xf]
        %v1649 = vld [vmem:[%s960 + $0x38] sm:$0xf]
        %v1650 = vld [vmem:[%s960 + $0x3c] sm:$0xf]
        %v1651 = vld [vmem:[%s968] sm:$0x1]
        %v1653 = vlaneseq
        %v1654 = vshrl.u32 %v1653, 7
        %v1655 = vsub.s32 0, %v1654
        %v1656 = vrot.slane %v1651, %v1655
        %v1674 = vunpack.c.l.b16 %v1635
        %v1675 = vunpack.c.l.b16 %v1636
        %v1676 = vunpack.c.l.b16 %v1637
        %v1677 = vunpack.c.l.b16 %v1638
        %v1678 = vunpack.c.l.b16 %v1639
        %v1679 = vunpack.c.l.b16 %v1640
        %v1680 = vunpack.c.l.b16 %v1641
        %v1681 = vunpack.c.l.b16 %v1642
        %v1682 = vunpack.c.l.b16 %v1643
        %v1683 = vunpack.c.l.b16 %v1644
        %v1684 = vunpack.c.l.b16 %v1645
        %v1685 = vunpack.c.l.b16 %v1646
        %v1686 = vunpack.c.l.b16 %v1647
        %v1687 = vunpack.c.l.b16 %v1648
        %v1688 = vunpack.c.l.b16 %v1649
        %v1689 = vunpack.c.l.b16 %v1650
        %v1690 = vpack.c.b16 %v1675, %v1674
        %v1691 = vpack.c.b16 %v1677, %v1676
        %v1692 = vpack.c.b16 %v1679, %v1678
        %v1693 = vpack.c.b16 %v1681, %v1680
        %v1694 = vpack.c.b16 %v1683, %v1682
        %v1695 = vpack.c.b16 %v1685, %v1684
        %v1696 = vpack.c.b16 %v1687, %v1686
        %v1697 = vpack.c.b16 %v1689, %v1688
        %1706 = vmatprep.subr.bf16.mxu0 0
        %1707 = vmatpush1.bf16.msra.mxu0 %v1690
        %1708 = vmatprep.subr.bf16.mxu0 0
        %1709 = vmatpush1.bf16.msra.mxu0 %v1691
        %1710 = vmatprep.subr.bf16.mxu0 0
        %1711 = vmatpush1.bf16.msra.mxu0 %v1692
        %1712 = vmatprep.subr.bf16.mxu0 0
        %1713 = vmatpush1.bf16.msra.mxu0 %v1693
        %1714 = vmatprep.subr.bf16.mxu0 0
        %1715 = vmatpush1.bf16.msra.mxu0 %v1694
        %1716 = vmatprep.subr.bf16.mxu0 0
        %1717 = vmatpush1.bf16.msra.mxu0 %v1695
        %1718 = vmatprep.subr.bf16.mxu0 0
        %1719 = vmatpush1.bf16.msra.mxu0 %v1696
        %1720 = vmatprep.subr.bf16.mxu0 0
        %1721 = vmatpush1.bf16.msra.mxu0 %v1697
        %1722 = vmatprep.subr.bf16.mxu0 0
        %1723 = vmatpush1.bf16.msra.mxu0 0
        %1724 = vmatprep.subr.bf16.mxu0 0
        %1725 = vmatpush1.bf16.msra.mxu0 0
        %1726 = vmatprep.subr.bf16.mxu0 0
        %1727 = vmatpush1.bf16.msra.mxu0 0
        %1728 = vmatprep.subr.bf16.mxu0 0
        %1729 = vmatpush1.bf16.msra.mxu0 0
        %1730 = vmatprep.subr.bf16.mxu0 0
        %1731 = vmatpush1.bf16.msra.mxu0 0
        %1732 = vmatprep.subr.bf16.mxu0 0
        %1733 = vmatpush1.bf16.msra.mxu0 0
        %1734 = vmatprep.subr.bf16.mxu0 0
        %1735 = vmatpush1.bf16.msra.mxu0 0
        %1736 = vmatprep.subr.bf16.mxu0 0
        %1737 = vmatpush1.bf16.msra.mxu0 0
        %1738 = vmatprep.mubr.bf16.mxu0 0
        %1739 = vmatmul.mubr.bf16.gmra.mrb[0].mxu0 %v1634
        %v1740 = vpop.f32.mrb[0].mxu0
        %v1741 = vadd.f32 %v1656, %v1740
        %v1742 = vpop.f32.mrb[0].mxu0
        %v1743 = vpop.f32.mrb[0].mxu0
        %v1744 = vpop.f32.mrb[0].mxu0
        %1745 = vdwg.mxu0
        %v1746 = vadd.f32 %v1528, %v1741
        %1747 = vst.msk [vmem:[%s1083] sm:$0xff] %vm1105, %v1746
        %s1748 = sand.u32 %s492, 1
        %s1749 = scalar_lea.sflag [#allocation4], %s1748
        %s1750 = sand.u32 %s492, 1
        %s1751 = smul.addr %s1750, 8
        %s1752 = scalar_lea.vmem [#allocation22], %s1751
        // Predicated region
        $region161: #{transformer_forward.1} parent=87 // pred_check
          %p1753 = pneg %p502
        $region162: #{transformer_forward.1} parent=87 // pred_check_branch
          %1755 = sbr.rel (%p1753) target = $region164
        $region163: #{transformer_forward.1} parent=87 // pred_region
          %s1757 = ssub.s32 128, 128
          %1758 = vsyncadd %s1749, %s1757
          %s1759 = smul.addr %s39, 128
          %s1760 = scalar_lea.hbm %s17, %s1759
          %s1762 = sshll.u32 %s1752, 4
          %s1763 = int_to_ptr.vmem [resolvable:$true] %s1762
          %1765 = dma.vmem_to_hbm [thread:$0]  %s1763, 128, %s1760, %s1749
        $region164: #{transformer_forward.1} parent=87 // pred_fallthru
          _
      $region88: #{transformer_forward.1} parent=5 // pred_fallthru
        _
      %p1766 = scmp.le.s32.totalorder 2, %s30
      // Predicated region
      $region165: #{transformer_forward.1} parent=5 // pred_check
        %p1767 = pneg %p1766
      $region166: #{transformer_forward.1} parent=5 // pred_check_branch
        %1769 = sbr.rel (%p1767) target = $region168
      $region167: #{transformer_forward.1} parent=5 // pred_region
        %s1770 = ssub.s32 %s30, 2
        // Predicated region
        $region169: #{transformer_forward.1} parent=167 // pred_check
          %p1771 = pneg %p508
        $region170: #{transformer_forward.1} parent=167 // pred_check_branch
          %1773 = sbr.rel (%p1771) target = $region172
        $region171: #{transformer_forward.1} parent=167 // pred_region
          %s1774 = sand.u32 %s493, 1
          %s1775 = scalar_lea.sflag [#allocation4], %s1774
          %s1776 = sand.u32 %s493, 1
          %s1777 = smul.addr %s1776, 8
          %s1778 = scalar_lea.vmem [#allocation22], %s1777
          %1779 = dma.done %s1775, 128
        $region172: #{transformer_forward.1} parent=167 // pred_fallthru
          _
      $region168: #{transformer_forward.1} parent=5 // pred_fallthru
        _
    $region6: #{transformer_forward.1} parent=1 // loop_footer
      %s34 = sadd.s32 1, %s30
    $region7: #{transformer_forward.1} parent=1 // loop_footer_branch
      %29 = sbr.rel target = $region3
    $region8: #{transformer_forward.1} parent=1 // loop_exit
      _
    %1780 = vsyncpa [#allocation3], 1
    %s1781 = scalar_lea.sflag [#allocation3], 1
    %1782 = vsyncpa %s1781, 1
    %1783 = vsyncpa [#allocation6], 1
    %1784 = vsyncpa [#allocation4], 1
    %s1785 = scalar_lea.sflag [#allocation4], 1
    %1786 = vsyncpa %s1785, 1

</llo_original>
